<compile_context>
chip_gen: v7x
topology: tpu7x:2x2x1
jax: 0.10.0
libtpu: 0.0.40
codegen_flags: <defaults>
</compile_context>

<pallas_src>
import jax
import jax.numpy as jnp
from jax.experimental import pallas as pl
from jax.experimental.pallas import tpu as pltpu

# Logical (PyTorch) sizes.
D_IN, D_H1, D_H2, D_OUT = 130, 600, 300, 82
# Lane/sublane-aligned padded sizes used inside the kernel.
D_IN_P, D_H1_P, D_H2_P, D_OUT_P = 256, 640, 384, 128


def _round_up(n, m):
    return ((n + m - 1) // m) * m


def _ceil_div(a, b):
    return -(-a // b)


def mlp_kernel(x_ref, w1_ref, b1_ref, w2_ref, b2_ref, w3_ref, b3_ref, o_ref):
    # x tile: (TB, D_IN_P) bf16.  w1/w2/w3: bf16.  b1/b2: bf16, b3: f32.
    x = x_ref[...]

    # fc1 + relu  (bf16 MXU inputs, f32 accumulation, bf16 epilogue)
    h1 = jnp.dot(x, w1_ref[...], preferred_element_type=jnp.float32)
    h1 = jnp.maximum(h1.astype(jnp.bfloat16) + b1_ref[...], 0.0)

    # fc2 + relu  (bf16 epilogue feeds the next matmul with no extra cast)
    h2 = jnp.dot(h1, w2_ref[...], preferred_element_type=jnp.float32)
    h2 = jnp.maximum(h2.astype(jnp.bfloat16) + b2_ref[...], 0.0)

    # fc3 (no activation): keep the final bias add / store in f32.
    out = jnp.dot(h2, w3_ref[...], preferred_element_type=jnp.float32)
    o_ref[...] = (out + b3_ref[...]).astype(o_ref.dtype)


def _choose_tiling(B, max_batch_tile):
    """Pick (TB, num_tiles): TB multiple of 8, minimal last-tile waste, and
    >= 2 grid steps for large batches so v7x can use both TensorCores."""
    num_tiles = max(1, _ceil_div(B, max_batch_tile))
    if num_tiles == 1 and B >= 512:
        num_tiles = 2
    TB = _round_up(_ceil_div(B, num_tiles), 8)
    return TB, num_tiles


def mlp_forward(x, params, *, max_batch_tile=512):
    """x: (B, D_IN) f32 (or bf16).  params: padded bf16 weights, bf16/f32 biases."""
    w1, b1, w2, b2, w3, b3 = params
    B = x.shape[0]

    TB, num_tiles = _choose_tiling(B, max_batch_tile)
    B_pad = TB * num_tiles

    # Pad batch rows + K (feature) dim and cast to bf16 in one op; padded K
    # cols of x and the matching padded rows of w1 are zero, so they
    # contribute nothing to the f32 accumulation.
    x_p = jnp.zeros((B_pad, D_IN_P), jnp.bfloat16).at[:B, :D_IN].set(
        x.astype(jnp.bfloat16))

    grid = (num_tiles,)
    out_p = pl.pallas_call(
        mlp_kernel,
        out_shape=jax.ShapeDtypeStruct((B_pad, D_OUT_P), jnp.float32),
        grid_spec=pltpu.PrefetchScalarGridSpec(
            num_scalar_prefetch=0,
            grid=grid,
            in_specs=[
                # Activations: tiled over batch, bf16.
                pl.BlockSpec((TB, D_IN_P), lambda i: (i, 0)),
                # Weights / biases: constant block index -> loaded once,
                # resident in VMEM across all batch tiles.
                pl.BlockSpec((D_IN_P, D_H1_P), lambda i: (0, 0)),
                pl.BlockSpec((1, D_H1_P), lambda i: (0, 0)),
                pl.BlockSpec((D_H1_P, D_H2_P), lambda i: (0, 0)),
                pl.BlockSpec((1, D_H2_P), lambda i: (0, 0)),
                pl.BlockSpec((D_H2_P, D_OUT_P), lambda i: (0, 0)),
                pl.BlockSpec((1, D_OUT_P), lambda i: (0, 0)),
            ],
            out_specs=pl.BlockSpec((TB, D_OUT_P), lambda i: (i, 0)),
        ),
        compiler_params=pltpu.CompilerParams(
            dimension_semantics=("parallel",),
        ),
    )(x_p, w1, b1, w2, b2, w3, b3)

    # Slice padded batch rows and padded output columns back off.
    return out_p[:B, :D_OUT]


def init_params(key):
    """PyTorch-Linear-style init (uniform +-1/sqrt(fan_in)), zero-padded to the
    aligned shapes.  Weights bf16 as (in_p, out_p); b1/b2 bf16, b3 f32."""
    ks = jax.random.split(key, 6)

    def linear(kw, kb, fan_in, fan_out, in_p, out_p, bias_dtype):
        bound = 1.0 / jnp.sqrt(jnp.float32(fan_in))
        w = jax.random.uniform(kw, (fan_in, fan_out), jnp.float32, -bound, bound)
        b = jax.random.uniform(kb, (1, fan_out), jnp.float32, -bound, bound)
        w_p = jnp.zeros((in_p, out_p), jnp.float32).at[:fan_in, :fan_out].set(w)
        b_p = jnp.zeros((1, out_p), jnp.float32).at[:, :fan_out].set(b)
        return w_p.astype(jnp.bfloat16), b_p.astype(bias_dtype)

    w1, b1 = linear(ks[0], ks[1], D_IN, D_H1, D_IN_P, D_H1_P, jnp.bfloat16)
    w2, b2 = linear(ks[2], ks[3], D_H1, D_H2, D_H1_P, D_H2_P, jnp.bfloat16)
    w3, b3 = linear(ks[4], ks[5], D_H2, D_OUT, D_H2_P, D_OUT_P, jnp.float32)
    return (w1, b1, w2, b2, w3, b3)


def mlp_reference(x, params):
    """Pure-JAX reference using exactly the kernel's numerics policy
    (bf16 matmul inputs, f32 accumulation, bf16 fc1/fc2 epilogue, f32 fc3)."""
    w1, b1, w2, b2, w3, b3 = params
    x_p = jnp.zeros((x.shape[0], D_IN_P), jnp.bfloat16).at[:, :D_IN].set(
        x.astype(jnp.bfloat16))
    h1 = jnp.dot(x_p, w1, preferred_element_type=jnp.float32)
    h1 = jnp.maximum(h1.astype(jnp.bfloat16) + b1, 0.0)
    h2 = jnp.dot(h1, w2, preferred_element_type=jnp.float32)
    h2 = jnp.maximum(h2.astype(jnp.bfloat16) + b2, 0.0)
    out = jnp.dot(h2, w3, preferred_element_type=jnp.float32) + b3
    return out[:, :D_OUT]


if __name__ == "__main__":
    key = jax.random.PRNGKey(0)
    kx, kx2, kp = jax.random.split(key, 3)
    params = init_params(kp)

    # Small-batch / single-tile case.
    B = 8
    x = jax.random.normal(kx, (B, D_IN), jnp.float32)
    out = jax.block_until_ready(mlp_forward(x, params))
    ref = mlp_reference(x, params)
    assert out.shape == (B, D_OUT), out.shape
    assert jnp.allclose(out, ref, atol=1e-2, rtol=1e-2), "mismatch (B=8)"

    # Multi-tile case: forces a 3-step grid (TB=200) to exercise the pipeline
    # and the constant-index (VMEM-resident) weight BlockSpecs.
    B2 = 600
    x2 = jax.random.normal(kx2, (B2, D_IN), jnp.float32)
    out2 = jax.block_until_ready(mlp_forward(x2, params, max_batch_tile=256))
    ref2 = mlp_reference(x2, params)
    assert out2.shape == (B2, D_OUT), out2.shape
    assert jnp.allclose(out2, ref2, atol=1e-2, rtol=1e-2), "mismatch (B=600)"

    print("KERNEL_OK")
</pallas_src>

<mosaic_0001>
module attributes {stable_mosaic.version = 11 : i64} {
  func.func @mlp_kernel(%arg0: i32, %arg1: memref<8x256xbf16, #tpu.memory_space<vmem>>, %arg2: memref<256x640xbf16, #tpu.memory_space<vmem>>, %arg3: memref<1x640xbf16, #tpu.memory_space<vmem>>, %arg4: memref<640x384xbf16, #tpu.memory_space<vmem>>, %arg5: memref<1x384xbf16, #tpu.memory_space<vmem>>, %arg6: memref<384x128xbf16, #tpu.memory_space<vmem>>, %arg7: memref<1x128xf32, #tpu.memory_space<vmem>>, %arg8: memref<8x128xf32, #tpu.memory_space<vmem>>) attributes {dimension_semantics = [#tpu.dimension_semantics<parallel>], iteration_bounds = array<i64: 1>, scalar_prefetch = 0 : i64, scratch_operands = 0 : i64, tpu.core_type = #tpu.core_type<tc>, window_params = [{transform_indices = @transform_0, window_bounds = array<i64: 8, 256>}, {pipeline_mode = #tpu.pipeline_mode<synchronous>, transform_indices = @transform_1, window_bounds = array<i64: 256, 640>}, {pipeline_mode = #tpu.pipeline_mode<synchronous>, transform_indices = @transform_2, window_bounds = array<i64: 1, 640>}, {pipeline_mode = #tpu.pipeline_mode<synchronous>, transform_indices = @transform_3, window_bounds = array<i64: 640, 384>}, {pipeline_mode = #tpu.pipeline_mode<synchronous>, transform_indices = @transform_4, window_bounds = array<i64: 1, 384>}, {pipeline_mode = #tpu.pipeline_mode<synchronous>, transform_indices = @transform_5, window_bounds = array<i64: 384, 128>}, {pipeline_mode = #tpu.pipeline_mode<synchronous>, transform_indices = @transform_6, window_bounds = array<i64: 1, 128>}, {transform_indices = @transform_7, window_bounds = array<i64: 8, 128>}]} {
    %c0 = arith.constant 0 : index
    %c0_0 = arith.constant 0 : index
    %0 = vector.load %arg1[%c0, %c0_0] : memref<8x256xbf16, #tpu.memory_space<vmem>>, vector<8x256xbf16>
    %c0_1 = arith.constant 0 : index
    %c0_2 = arith.constant 0 : index
    %1 = vector.load %arg2[%c0_1, %c0_2] : memref<256x640xbf16, #tpu.memory_space<vmem>>, vector<256x640xbf16>
    %cst = arith.constant dense<0.000000e+00> : vector<8x640xf32>
    %2 = tpu.matmul %0, %1, %cst {dimension_numbers = #tpu.dot_dimension_numbers<[1], [0], [0], [1], [0, 0, 1, 1], [], []>} : vector<8x256xbf16>, vector<256x640xbf16>, vector<8x640xf32> -> vector<8x640xf32>
    %3 = arith.truncf %2 : vector<8x640xf32> to vector<8x640xbf16>
    %c0_3 = arith.constant 0 : index
    %c0_4 = arith.constant 0 : index
    %4 = vector.load %arg3[%c0_3, %c0_4] : memref<1x640xbf16, #tpu.memory_space<vmem>>, vector<1x640xbf16>
    %5 = vector.broadcast %4 : vector<1x640xbf16> to vector<8x640xbf16>
    %6 = arith.addf %3, %5 : vector<8x640xbf16>
    %cst_5 = arith.constant 0.000000e+00 : bf16
    %7 = vector.broadcast %cst_5 : bf16 to vector<8x640xbf16>
    %8 = arith.maximumf %6, %7 : vector<8x640xbf16>
    %c0_6 = arith.constant 0 : index
    %c0_7 = arith.constant 0 : index
    %9 = vector.load %arg4[%c0_6, %c0_7] : memref<640x384xbf16, #tpu.memory_space<vmem>>, vector<640x384xbf16>
    %cst_8 = arith.constant dense<0.000000e+00> : vector<8x384xf32>
    %10 = tpu.matmul %8, %9, %cst_8 {dimension_numbers = #tpu.dot_dimension_numbers<[1], [0], [0], [1], [0, 0, 1, 1], [], []>} : vector<8x640xbf16>, vector<640x384xbf16>, vector<8x384xf32> -> vector<8x384xf32>
    %11 = arith.truncf %10 : vector<8x384xf32> to vector<8x384xbf16>
    %c0_9 = arith.constant 0 : index
    %c0_10 = arith.constant 0 : index
    %12 = vector.load %arg5[%c0_9, %c0_10] : memref<1x384xbf16, #tpu.memory_space<vmem>>, vector<1x384xbf16>
    %13 = vector.broadcast %12 : vector<1x384xbf16> to vector<8x384xbf16>
    %14 = arith.addf %11, %13 : vector<8x384xbf16>
    %cst_11 = arith.constant 0.000000e+00 : bf16
    %15 = vector.broadcast %cst_11 : bf16 to vector<8x384xbf16>
    %16 = arith.maximumf %14, %15 : vector<8x384xbf16>
    %c0_12 = arith.constant 0 : index
    %c0_13 = arith.constant 0 : index
    %17 = vector.load %arg6[%c0_12, %c0_13] : memref<384x128xbf16, #tpu.memory_space<vmem>>, vector<384x128xbf16>
    %cst_14 = arith.constant dense<0.000000e+00> : vector<8x128xf32>
    %18 = tpu.matmul %16, %17, %cst_14 {dimension_numbers = #tpu.dot_dimension_numbers<[1], [0], [0], [1], [0, 0, 1, 1], [], []>} : vector<8x384xbf16>, vector<384x128xbf16>, vector<8x128xf32> -> vector<8x128xf32>
    %c0_15 = arith.constant 0 : index
    %c0_16 = arith.constant 0 : index
    %19 = vector.load %arg7[%c0_15, %c0_16] : memref<1x128xf32, #tpu.memory_space<vmem>>, vector<1x128xf32>
    %20 = vector.broadcast %19 : vector<1x128xf32> to vector<8x128xf32>
    %21 = arith.addf %18, %20 : vector<8x128xf32>
    %c0_17 = arith.constant 0 : index
    %c0_18 = arith.constant 0 : index
    %22 = vector.load %arg8[%c0_17, %c0_18] : memref<8x128xf32, #tpu.memory_space<vmem>>, vector<8x128xf32>
    tpu.vector_store %arg8[%c0_17, %c0_18], %21 {strides = array<i32>} : memref<8x128xf32, #tpu.memory_space<vmem>>, vector<8x128xf32>,
    return
  }
  func.func @transform_0(%arg0: i32) -> (i32, i32) {
    %c0_i32 = arith.constant 0 : i32
    %c0_i32_0 = arith.constant 0 : i32
    return %arg0, %c0_i32 : i32, i32
  }
  func.func @transform_1(%arg0: i32) -> (i32, i32) {
    %c0_i32 = arith.constant 0 : i32
    %c0_i32_0 = arith.constant 0 : i32
    %c0_i32_1 = arith.constant 0 : i32
    return %c0_i32, %c0_i32_0 : i32, i32
  }
  func.func @transform_2(%arg0: i32) -> (i32, i32) {
    %c0_i32 = arith.constant 0 : i32
    %c0_i32_0 = arith.constant 0 : i32
    %c0_i32_1 = arith.constant 0 : i32
    return %c0_i32, %c0_i32_0 : i32, i32
  }
  func.func @transform_3(%arg0: i32) -> (i32, i32) {
    %c0_i32 = arith.constant 0 : i32
    %c0_i32_0 = arith.constant 0 : i32
    %c0_i32_1 = arith.constant 0 : i32
    return %c0_i32, %c0_i32_0 : i32, i32
  }
  func.func @transform_4(%arg0: i32) -> (i32, i32) {
    %c0_i32 = arith.constant 0 : i32
    %c0_i32_0 = arith.constant 0 : i32
    %c0_i32_1 = arith.constant 0 : i32
    return %c0_i32, %c0_i32_0 : i32, i32
  }
  func.func @transform_5(%arg0: i32) -> (i32, i32) {
    %c0_i32 = arith.constant 0 : i32
    %c0_i32_0 = arith.constant 0 : i32
    %c0_i32_1 = arith.constant 0 : i32
    return %c0_i32, %c0_i32_0 : i32, i32
  }
  func.func @transform_6(%arg0: i32) -> (i32, i32) {
    %c0_i32 = arith.constant 0 : i32
    %c0_i32_0 = arith.constant 0 : i32
    %c0_i32_1 = arith.constant 0 : i32
    return %c0_i32, %c0_i32_0 : i32, i32
  }
  func.func @transform_7(%arg0: i32) -> (i32, i32) {
    %c0_i32 = arith.constant 0 : i32
    %c0_i32_0 = arith.constant 0 : i32
    return %arg0, %c0_i32 : i32, i32
  }
}

</mosaic_0001>

<llo_original>
// kernel: tpu_custom_call.1
$region0: #{tpu_custom_call.1}
  #allocation0 [shape = 'u32[]', space=smem, size = 0x4, offset = 0x4, fixed_abs, tag = 'smem constant byte address 0x4 - core index']
  #allocation1 [shape = 'u32[144,128]{1,0:T(1,128)}', space=vmem, size = 0x12000, scoped, tag = 'internal scratch']
  %s0 = inlined_call_operand.hbm [shape: bf16[8,256], index: 0, kind: input, shape index: {}]
  %s1 = inlined_call_operand.hbm [shape: bf16[256,640], index: 1, kind: input, shape index: {}]
  %s2 = inlined_call_operand.vmem [shape: bf16[1,640], index: 2, kind: input, shape index: {}]
  %s3 = inlined_call_operand.hbm [shape: bf16[640,384], index: 3, kind: input, shape index: {}]
  %s4 = inlined_call_operand.vmem [shape: bf16[1,384], index: 4, kind: input, shape index: {}]
  %s5 = inlined_call_operand.hbm [shape: bf16[384,128], index: 5, kind: input, shape index: {}]
  %s6 = inlined_call_operand.vmem [shape: f32[1,128], index: 6, kind: input, shape index: {}]
  %s7 = inlined_call_operand.hbm [shape: f32[8,128], index: 7, kind: output, shape index: {}]
  %s8 = sld [smem:[#allocation0]]
  $region54: #{tpu_custom_call.1} parent=0
    _
  %s10 = ssub.s32 1, %s8
  %s11 = scalar_select 0, %s10, %s8
  $region1: #{tpu_custom_call.1} parent=0
    #allocation2 [shape = 'u8[4096]{0}', space=vmem, size = 0x1000, scoped, tag = 'input window, operand 0, single buffered']
    #allocation3 [shape = 's32[1]{0}', space=sflag, size = 0x4, scoped, tag = 'scoped memory for tpu_custom_call.1']
    #allocation4 [shape = 's32[1]{0}', space=sflag, size = 0x4, scoped, tag = 'scoped memory for tpu_custom_call.1']
    #allocation5 [shape = 'u8[327680]{0}', space=vmem, size = 0x50000, scoped, tag = 'input window, operand 1, single buffered']
    #allocation6 [shape = 's32[1]{0}', space=sflag, size = 0x4, scoped, tag = 'scoped memory for tpu_custom_call.1']
    #allocation7 [shape = 'u8[491520]{0}', space=vmem, size = 0x78000, scoped, tag = 'input window, operand 3, single buffered']
    #allocation8 [shape = 'u8[98304]{0}', space=vmem, size = 0x18000, scoped, tag = 'input window, operand 5, single buffered']
    #allocation9 [shape = 's32[1]{0}', space=sflag, size = 0x4, scoped, tag = 'scoped memory for tpu_custom_call.1']
    #allocation10 [shape = 'u8[4096]{0}', space=vmem, size = 0x1000, scoped, tag = 'output window, operand 0, single buffered']
    %12 = vsyncpa [#allocation3], 0
    %13 = vsyncpa [#allocation6], 0
    %14 = vsyncpa [#allocation9], 0
    %15 = vsyncpa [#allocation4], 0
    // Predicated region
    $region2: #{tpu_custom_call.1} parent=1 // pred_check
      _
    $region3: #{tpu_custom_call.1} parent=1 // pred_check_branch
      %17 = sbr.rel (0) target = $region5
    $region4: #{tpu_custom_call.1} parent=1 // pred_region
      %s19 = ssub.s32 128, 128
      %20 = vsyncadd [#allocation3], %s19
      %s22 = sshll.u32 [#allocation2], 4
      %s23 = int_to_ptr.vmem [resolvable:$true] %s22
      %25 = dma.hbm_to_vmem [thread:$0]  %s0, 128, %s23, [#allocation3]
    $region5: #{tpu_custom_call.1} parent=1 // pred_fallthru
      _
    // Predicated region
    $region6: #{tpu_custom_call.1} parent=1 // pred_check
      _
    $region7: #{tpu_custom_call.1} parent=1 // pred_check_branch
      %27 = sbr.rel (0) target = $region9
    $region8: #{tpu_custom_call.1} parent=1 // pred_region
      %s29 = ssub.s32 10240, 10240
      %30 = vsyncadd [#allocation6], %s29
      %s31 = sshll.u32 [#allocation5], 4
      %s32 = int_to_ptr.vmem [resolvable:$true] %s31
      %37 = dma.hbm_to_vmem [thread:$0]  %s1, 10240, %s32, [#allocation6], 320, 320, 20
    $region9: #{tpu_custom_call.1} parent=1 // pred_fallthru
      _
    // Predicated region
    $region10: #{tpu_custom_call.1} parent=1 // pred_check
      _
    $region11: #{tpu_custom_call.1} parent=1 // pred_check_branch
      %39 = sbr.rel (0) target = $region13
    $region12: #{tpu_custom_call.1} parent=1 // pred_region
      _
    $region13: #{tpu_custom_call.1} parent=1 // pred_fallthru
      _
    // Predicated region
    $region14: #{tpu_custom_call.1} parent=1 // pred_check
      _
    $region15: #{tpu_custom_call.1} parent=1 // pred_check_branch
      %41 = sbr.rel (0) target = $region17
    $region16: #{tpu_custom_call.1} parent=1 // pred_region
      %s43 = ssub.s32 15360, 15360
      %44 = vsyncadd [#allocation6], %s43
      %s45 = sshll.u32 [#allocation7], 4
      %s46 = int_to_ptr.vmem [resolvable:$true] %s45
      %51 = dma.hbm_to_vmem [thread:$0]  %s3, 15360, %s46, [#allocation6], 192, 192, 12
    $region17: #{tpu_custom_call.1} parent=1 // pred_fallthru
      _
    // Predicated region
    $region18: #{tpu_custom_call.1} parent=1 // pred_check
      _
    $region19: #{tpu_custom_call.1} parent=1 // pred_check_branch
      %53 = sbr.rel (0) target = $region21
    $region20: #{tpu_custom_call.1} parent=1 // pred_region
      _
    $region21: #{tpu_custom_call.1} parent=1 // pred_fallthru
      _
    // Predicated region
    $region22: #{tpu_custom_call.1} parent=1 // pred_check
      _
    $region23: #{tpu_custom_call.1} parent=1 // pred_check_branch
      %55 = sbr.rel (0) target = $region25
    $region24: #{tpu_custom_call.1} parent=1 // pred_region
      %s57 = ssub.s32 3072, 3072
      %58 = vsyncadd [#allocation9], %s57
      %s59 = sshll.u32 [#allocation8], 4
      %s60 = int_to_ptr.vmem [resolvable:$true] %s59
      %65 = dma.hbm_to_vmem [thread:$0]  %s5, 3072, %s60, [#allocation9], 64, 64, 4
    $region25: #{tpu_custom_call.1} parent=1 // pred_fallthru
      _
    // Predicated region
    $region26: #{tpu_custom_call.1} parent=1 // pred_check
      _
    $region27: #{tpu_custom_call.1} parent=1 // pred_check_branch
      %67 = sbr.rel (0) target = $region29
    $region28: #{tpu_custom_call.1} parent=1 // pred_region
      _
    $region29: #{tpu_custom_call.1} parent=1 // pred_fallthru
      _
    // Predicated region
    $region30: #{tpu_custom_call.1} parent=1 // pred_check
      _
    $region31: #{tpu_custom_call.1} parent=1 // pred_check_branch
      %69 = sbr.rel (0) target = $region33
    $region32: #{tpu_custom_call.1} parent=1 // pred_region
      %70 = dma.done [#allocation3], 128
    $region33: #{tpu_custom_call.1} parent=1 // pred_fallthru
      _
    // Predicated region
    $region34: #{tpu_custom_call.1} parent=1 // pred_check
      _
    $region35: #{tpu_custom_call.1} parent=1 // pred_check_branch
      %72 = sbr.rel (0) target = $region37
    $region36: #{tpu_custom_call.1} parent=1 // pred_region
      %73 = dma.done [#allocation6], 10240
    $region37: #{tpu_custom_call.1} parent=1 // pred_fallthru
      _
    // Predicated region
    $region38: #{tpu_custom_call.1} parent=1 // pred_check
      _
    $region39: #{tpu_custom_call.1} parent=1 // pred_check_branch
      %75 = sbr.rel (0) target = $region41
    $region40: #{tpu_custom_call.1} parent=1 // pred_region
      %76 = dma.done [#allocation6], 15360
    $region41: #{tpu_custom_call.1} parent=1 // pred_fallthru
      _
    // Predicated region
    $region42: #{tpu_custom_call.1} parent=1 // pred_check
      _
    $region43: #{tpu_custom_call.1} parent=1 // pred_check_branch
      %78 = sbr.rel (0) target = $region45
    $region44: #{tpu_custom_call.1} parent=1 // pred_region
      %79 = dma.done [#allocation9], 3072
    $region45: #{tpu_custom_call.1} parent=1 // pred_fallthru
      _
    %v81 = vld [vmem:[#allocation2] sm:$0xff]
    %v82 = vld [vmem:[#allocation5] sm:$0xff]
    %v83 = vld [vmem:[#allocation5 + $0x8] sm:$0xff]
    %v84 = vld [vmem:[#allocation5 + $0x10] sm:$0xf]
    %v85 = vld [vmem:[#allocation5 + $0x14] sm:$0xff]
    %v86 = vld [vmem:[#allocation5 + $0x1c] sm:$0xff]
    %v87 = vld [vmem:[#allocation5 + $0x24] sm:$0xf]
    %v88 = vld [vmem:[#allocation5 + $0x28] sm:$0xff]
    %v89 = vld [vmem:[#allocation5 + $0x30] sm:$0xff]
    %v90 = vld [vmem:[#allocation5 + $0x38] sm:$0xf]
    %v91 = vld [vmem:[#allocation5 + $0x3c] sm:$0xff]
    %v92 = vld [vmem:[#allocation5 + $0x44] sm:$0xff]
    %v93 = vld [vmem:[#allocation5 + $0x4c] sm:$0xf]
    %v94 = vld [vmem:[#allocation5 + $0x50] sm:$0xff]
    %v95 = vld [vmem:[#allocation5 + $0x58] sm:$0xff]
    %v96 = vld [vmem:[#allocation5 + $0x60] sm:$0xf]
    %v97 = vld [vmem:[#allocation5 + $0x64] sm:$0xff]
    %v98 = vld [vmem:[#allocation5 + $0x6c] sm:$0xff]
    %v99 = vld [vmem:[#allocation5 + $0x74] sm:$0xf]
    %v100 = vld [vmem:[#allocation5 + $0x78] sm:$0xff]
    %v101 = vld [vmem:[#allocation5 + $0x80] sm:$0xff]
    %v102 = vld [vmem:[#allocation5 + $0x88] sm:$0xf]
    %v103 = vld [vmem:[#allocation5 + $0x8c] sm:$0xff]
    %v104 = vld [vmem:[#allocation5 + $0x94] sm:$0xff]
    %v105 = vld [vmem:[#allocation5 + $0x9c] sm:$0xf]
    %v106 = vld [vmem:[#allocation5 + $0xa0] sm:$0xff]
    %v107 = vld [vmem:[#allocation5 + $0xa8] sm:$0xff]
    %v108 = vld [vmem:[#allocation5 + $0xb0] sm:$0xf]
    %v109 = vld [vmem:[#allocation5 + $0xb4] sm:$0xff]
    %v110 = vld [vmem:[#allocation5 + $0xbc] sm:$0xff]
    %v111 = vld [vmem:[#allocation5 + $0xc4] sm:$0xf]
    %v112 = vld [vmem:[#allocation5 + $0xc8] sm:$0xff]
    %v113 = vld [vmem:[#allocation5 + $0xd0] sm:$0xff]
    %v114 = vld [vmem:[#allocation5 + $0xd8] sm:$0xf]
    %v115 = vld [vmem:[#allocation5 + $0xdc] sm:$0xff]
    %v116 = vld [vmem:[#allocation5 + $0xe4] sm:$0xff]
    %v117 = vld [vmem:[#allocation5 + $0xec] sm:$0xf]
    %v118 = vld [vmem:[#allocation5 + $0xf0] sm:$0xff]
    %v119 = vld [vmem:[#allocation5 + $0xf8] sm:$0xff]
    %v120 = vld [vmem:[#allocation5 + $0x100] sm:$0xf]
    %v121 = vld [vmem:[#allocation5 + $0x104] sm:$0xff]
    %v122 = vld [vmem:[#allocation5 + $0x10c] sm:$0xff]
    %v123 = vld [vmem:[#allocation5 + $0x114] sm:$0xf]
    %v124 = vld [vmem:[#allocation5 + $0x118] sm:$0xff]
    %v125 = vld [vmem:[#allocation5 + $0x120] sm:$0xff]
    %v126 = vld [vmem:[#allocation5 + $0x128] sm:$0xf]
    %v127 = vld [vmem:[#allocation5 + $0x12c] sm:$0xff]
    %v128 = vld [vmem:[#allocation5 + $0x134] sm:$0xff]
    %v129 = vld [vmem:[#allocation5 + $0x13c] sm:$0xf]
    %v130 = vld [vmem:[#allocation5 + $0x140] sm:$0xff]
    %v131 = vld [vmem:[#allocation5 + $0x148] sm:$0xff]
    %v132 = vld [vmem:[#allocation5 + $0x150] sm:$0xf]
    %v133 = vld [vmem:[#allocation5 + $0x154] sm:$0xff]
    %v134 = vld [vmem:[#allocation5 + $0x15c] sm:$0xff]
    %v135 = vld [vmem:[#allocation5 + $0x164] sm:$0xf]
    %v136 = vld [vmem:[#allocation5 + $0x168] sm:$0xff]
    %v137 = vld [vmem:[#allocation5 + $0x170] sm:$0xff]
    %v138 = vld [vmem:[#allocation5 + $0x178] sm:$0xf]
    %v139 = vld [vmem:[#allocation5 + $0x17c] sm:$0xff]
    %v140 = vld [vmem:[#allocation5 + $0x184] sm:$0xff]
    %v141 = vld [vmem:[#allocation5 + $0x18c] sm:$0xf]
    %v142 = vld [vmem:[#allocation5 + $0x190] sm:$0xff]
    %v143 = vld [vmem:[#allocation5 + $0x198] sm:$0xff]
    %v144 = vld [vmem:[#allocation5 + $0x1a0] sm:$0xf]
    %v145 = vld [vmem:[#allocation5 + $0x1a4] sm:$0xff]
    %v146 = vld [vmem:[#allocation5 + $0x1ac] sm:$0xff]
    %v147 = vld [vmem:[#allocation5 + $0x1b4] sm:$0xf]
    %v148 = vld [vmem:[#allocation5 + $0x1b8] sm:$0xff]
    %v149 = vld [vmem:[#allocation5 + $0x1c0] sm:$0xff]
    %v150 = vld [vmem:[#allocation5 + $0x1c8] sm:$0xf]
    %v151 = vld [vmem:[#allocation5 + $0x1cc] sm:$0xff]
    %v152 = vld [vmem:[#allocation5 + $0x1d4] sm:$0xff]
    %v153 = vld [vmem:[#allocation5 + $0x1dc] sm:$0xf]
    %v154 = vld [vmem:[#allocation5 + $0x1e0] sm:$0xff]
    %v155 = vld [vmem:[#allocation5 + $0x1e8] sm:$0xff]
    %v156 = vld [vmem:[#allocation5 + $0x1f0] sm:$0xf]
    %v157 = vld [vmem:[#allocation5 + $0x1f4] sm:$0xff]
    %v158 = vld [vmem:[#allocation5 + $0x1fc] sm:$0xff]
    %v159 = vld [vmem:[#allocation5 + $0x204] sm:$0xf]
    %v160 = vld [vmem:[#allocation5 + $0x208] sm:$0xff]
    %v161 = vld [vmem:[#allocation5 + $0x210] sm:$0xff]
    %v162 = vld [vmem:[#allocation5 + $0x218] sm:$0xf]
    %v163 = vld [vmem:[#allocation5 + $0x21c] sm:$0xff]
    %v164 = vld [vmem:[#allocation5 + $0x224] sm:$0xff]
    %v165 = vld [vmem:[#allocation5 + $0x22c] sm:$0xf]
    %v166 = vld [vmem:[#allocation5 + $0x230] sm:$0xff]
    %v167 = vld [vmem:[#allocation5 + $0x238] sm:$0xff]
    %v168 = vld [vmem:[#allocation5 + $0x240] sm:$0xf]
    %v169 = vld [vmem:[#allocation5 + $0x244] sm:$0xff]
    %v170 = vld [vmem:[#allocation5 + $0x24c] sm:$0xff]
    %v171 = vld [vmem:[#allocation5 + $0x254] sm:$0xf]
    %v172 = vld [vmem:[#allocation5 + $0x258] sm:$0xff]
    %v173 = vld [vmem:[#allocation5 + $0x260] sm:$0xff]
    %v174 = vld [vmem:[#allocation5 + $0x268] sm:$0xf]
    %v175 = vld [vmem:[#allocation5 + $0x26c] sm:$0xff]
    %v176 = vld [vmem:[#allocation5 + $0x274] sm:$0xff]
    %v177 = vld [vmem:[#allocation5 + $0x27c] sm:$0xf]
    %v179 = vunpack.c.l.b16 %v81
    %v180 = vunpack.c.h.b16 %v81
    %v181 = vpack.c.b16 %v179, %v179
    %v182 = vpack.c.b16 %v180, %v180
    %v281 = vunpack.c.l.b16 %v82
    %v282 = vunpack.c.h.b16 %v82
    %v283 = vunpack.c.l.b16 %v83
    %v284 = vunpack.c.h.b16 %v83
    %v285 = vunpack.c.l.b16 %v84
    %v286 = vunpack.c.l.b16 %v85
    %v287 = vunpack.c.h.b16 %v85
    %v288 = vunpack.c.l.b16 %v86
    %v289 = vunpack.c.h.b16 %v86
    %v290 = vunpack.c.l.b16 %v87
    %v291 = vunpack.c.l.b16 %v88
    %v292 = vunpack.c.h.b16 %v88
    %v293 = vunpack.c.l.b16 %v89
    %v294 = vunpack.c.h.b16 %v89
    %v295 = vunpack.c.l.b16 %v90
    %v296 = vunpack.c.l.b16 %v91
    %v297 = vunpack.c.h.b16 %v91
    %v298 = vunpack.c.l.b16 %v92
    %v299 = vunpack.c.h.b16 %v92
    %v300 = vunpack.c.l.b16 %v93
    %v301 = vunpack.c.l.b16 %v94
    %v302 = vunpack.c.h.b16 %v94
    %v303 = vunpack.c.l.b16 %v95
    %v304 = vunpack.c.h.b16 %v95
    %v305 = vunpack.c.l.b16 %v96
    %v306 = vunpack.c.l.b16 %v97
    %v307 = vunpack.c.h.b16 %v97
    %v308 = vunpack.c.l.b16 %v98
    %v309 = vunpack.c.h.b16 %v98
    %v310 = vunpack.c.l.b16 %v99
    %v311 = vunpack.c.l.b16 %v100
    %v312 = vunpack.c.h.b16 %v100
    %v313 = vunpack.c.l.b16 %v101
    %v314 = vunpack.c.h.b16 %v101
    %v315 = vunpack.c.l.b16 %v102
    %v316 = vunpack.c.l.b16 %v103
    %v317 = vunpack.c.h.b16 %v103
    %v318 = vunpack.c.l.b16 %v104
    %v319 = vunpack.c.h.b16 %v104
    %v320 = vunpack.c.l.b16 %v105
    %v321 = vunpack.c.l.b16 %v106
    %v322 = vunpack.c.h.b16 %v106
    %v323 = vunpack.c.l.b16 %v107
    %v324 = vunpack.c.h.b16 %v107
    %v325 = vunpack.c.l.b16 %v108
    %v326 = vunpack.c.l.b16 %v109
    %v327 = vunpack.c.h.b16 %v109
    %v328 = vunpack.c.l.b16 %v110
    %v329 = vunpack.c.h.b16 %v110
    %v330 = vunpack.c.l.b16 %v111
    %v331 = vunpack.c.l.b16 %v112
    %v332 = vunpack.c.h.b16 %v112
    %v333 = vunpack.c.l.b16 %v113
    %v334 = vunpack.c.h.b16 %v113
    %v335 = vunpack.c.l.b16 %v114
    %v336 = vunpack.c.l.b16 %v115
    %v337 = vunpack.c.h.b16 %v115
    %v338 = vunpack.c.l.b16 %v116
    %v339 = vunpack.c.h.b16 %v116
    %v340 = vunpack.c.l.b16 %v117
    %v341 = vunpack.c.l.b16 %v118
    %v342 = vunpack.c.h.b16 %v118
    %v343 = vunpack.c.l.b16 %v119
    %v344 = vunpack.c.h.b16 %v119
    %v345 = vunpack.c.l.b16 %v120
    %v346 = vunpack.c.l.b16 %v121
    %v347 = vunpack.c.h.b16 %v121
    %v348 = vunpack.c.l.b16 %v122
    %v349 = vunpack.c.h.b16 %v122
    %v350 = vunpack.c.l.b16 %v123
    %v351 = vunpack.c.l.b16 %v124
    %v352 = vunpack.c.h.b16 %v124
    %v353 = vunpack.c.l.b16 %v125
    %v354 = vunpack.c.h.b16 %v125
    %v355 = vunpack.c.l.b16 %v126
    %v356 = vunpack.c.l.b16 %v127
    %v357 = vunpack.c.h.b16 %v127
    %v358 = vunpack.c.l.b16 %v128
    %v359 = vunpack.c.h.b16 %v128
    %v360 = vunpack.c.l.b16 %v129
    %v361 = vunpack.c.l.b16 %v130
    %v362 = vunpack.c.h.b16 %v130
    %v363 = vunpack.c.l.b16 %v131
    %v364 = vunpack.c.h.b16 %v131
    %v365 = vunpack.c.l.b16 %v132
    %v366 = vunpack.c.l.b16 %v133
    %v367 = vunpack.c.h.b16 %v133
    %v368 = vunpack.c.l.b16 %v134
    %v369 = vunpack.c.h.b16 %v134
    %v370 = vunpack.c.l.b16 %v135
    %v371 = vunpack.c.l.b16 %v136
    %v372 = vunpack.c.h.b16 %v136
    %v373 = vunpack.c.l.b16 %v137
    %v374 = vunpack.c.h.b16 %v137
    %v375 = vunpack.c.l.b16 %v138
    %v376 = vunpack.c.l.b16 %v139
    %v377 = vunpack.c.h.b16 %v139
    %v378 = vunpack.c.l.b16 %v140
    %v379 = vunpack.c.h.b16 %v140
    %v380 = vunpack.c.l.b16 %v141
    %v381 = vunpack.c.l.b16 %v142
    %v382 = vunpack.c.h.b16 %v142
    %v383 = vunpack.c.l.b16 %v143
    %v384 = vunpack.c.h.b16 %v143
    %v385 = vunpack.c.l.b16 %v144
    %v386 = vunpack.c.l.b16 %v145
    %v387 = vunpack.c.h.b16 %v145
    %v388 = vunpack.c.l.b16 %v146
    %v389 = vunpack.c.h.b16 %v146
    %v390 = vunpack.c.l.b16 %v147
    %v391 = vunpack.c.l.b16 %v148
    %v392 = vunpack.c.h.b16 %v148
    %v393 = vunpack.c.l.b16 %v149
    %v394 = vunpack.c.h.b16 %v149
    %v395 = vunpack.c.l.b16 %v150
    %v396 = vunpack.c.l.b16 %v151
    %v397 = vunpack.c.h.b16 %v151
    %v398 = vunpack.c.l.b16 %v152
    %v399 = vunpack.c.h.b16 %v152
    %v400 = vunpack.c.l.b16 %v153
    %v401 = vunpack.c.l.b16 %v154
    %v402 = vunpack.c.h.b16 %v154
    %v403 = vunpack.c.l.b16 %v155
    %v404 = vunpack.c.h.b16 %v155
    %v405 = vunpack.c.l.b16 %v156
    %v406 = vunpack.c.l.b16 %v157
    %v407 = vunpack.c.h.b16 %v157
    %v408 = vunpack.c.l.b16 %v158
    %v409 = vunpack.c.h.b16 %v158
    %v410 = vunpack.c.l.b16 %v159
    %v411 = vunpack.c.l.b16 %v160
    %v412 = vunpack.c.h.b16 %v160
    %v413 = vunpack.c.l.b16 %v161
    %v414 = vunpack.c.h.b16 %v161
    %v415 = vunpack.c.l.b16 %v162
    %v416 = vunpack.c.l.b16 %v163
    %v417 = vunpack.c.h.b16 %v163
    %v418 = vunpack.c.l.b16 %v164
    %v419 = vunpack.c.h.b16 %v164
    %v420 = vunpack.c.l.b16 %v165
    %v421 = vunpack.c.l.b16 %v166
    %v422 = vunpack.c.h.b16 %v166
    %v423 = vunpack.c.l.b16 %v167
    %v424 = vunpack.c.h.b16 %v167
    %v425 = vunpack.c.l.b16 %v168
    %v426 = vunpack.c.l.b16 %v169
    %v427 = vunpack.c.h.b16 %v169
    %v428 = vunpack.c.l.b16 %v170
    %v429 = vunpack.c.h.b16 %v170
    %v430 = vunpack.c.l.b16 %v171
    %v431 = vunpack.c.l.b16 %v172
    %v432 = vunpack.c.h.b16 %v172
    %v433 = vunpack.c.l.b16 %v173
    %v434 = vunpack.c.h.b16 %v173
    %v435 = vunpack.c.l.b16 %v174
    %v436 = vunpack.c.l.b16 %v175
    %v437 = vunpack.c.h.b16 %v175
    %v438 = vunpack.c.l.b16 %v176
    %v439 = vunpack.c.h.b16 %v176
    %v440 = vunpack.c.l.b16 %v177
    %v441 = vpack.c.b16 %v286, %v281
    %v442 = vpack.c.b16 %v287, %v282
    %v443 = vpack.c.b16 %v288, %v283
    %v444 = vpack.c.b16 %v289, %v284
    %v445 = vpack.c.b16 %v290, %v285
    %v446 = vpack.c.b16 %v296, %v291
    %v447 = vpack.c.b16 %v297, %v292
    %v448 = vpack.c.b16 %v298, %v293
    %v449 = vpack.c.b16 %v299, %v294
    %v450 = vpack.c.b16 %v300, %v295
    %v451 = vpack.c.b16 %v306, %v301
    %v452 = vpack.c.b16 %v307, %v302
    %v453 = vpack.c.b16 %v308, %v303
    %v454 = vpack.c.b16 %v309, %v304
    %v455 = vpack.c.b16 %v310, %v305
    %v456 = vpack.c.b16 %v316, %v311
    %v457 = vpack.c.b16 %v317, %v312
    %v458 = vpack.c.b16 %v318, %v313
    %v459 = vpack.c.b16 %v319, %v314
    %v460 = vpack.c.b16 %v320, %v315
    %v461 = vpack.c.b16 %v326, %v321
    %v462 = vpack.c.b16 %v327, %v322
    %v463 = vpack.c.b16 %v328, %v323
    %v464 = vpack.c.b16 %v329, %v324
    %v465 = vpack.c.b16 %v330, %v325
    %v466 = vpack.c.b16 %v336, %v331
    %v467 = vpack.c.b16 %v337, %v332
    %v468 = vpack.c.b16 %v338, %v333
    %v469 = vpack.c.b16 %v339, %v334
    %v470 = vpack.c.b16 %v340, %v335
    %v471 = vpack.c.b16 %v346, %v341
    %v472 = vpack.c.b16 %v347, %v342
    %v473 = vpack.c.b16 %v348, %v343
    %v474 = vpack.c.b16 %v349, %v344
    %v475 = vpack.c.b16 %v350, %v345
    %v476 = vpack.c.b16 %v356, %v351
    %v477 = vpack.c.b16 %v357, %v352
    %v478 = vpack.c.b16 %v358, %v353
    %v479 = vpack.c.b16 %v359, %v354
    %v480 = vpack.c.b16 %v360, %v355
    %v481 = vpack.c.b16 %v366, %v361
    %v482 = vpack.c.b16 %v367, %v362
    %v483 = vpack.c.b16 %v368, %v363
    %v484 = vpack.c.b16 %v369, %v364
    %v485 = vpack.c.b16 %v370, %v365
    %v486 = vpack.c.b16 %v376, %v371
    %v487 = vpack.c.b16 %v377, %v372
    %v488 = vpack.c.b16 %v378, %v373
    %v489 = vpack.c.b16 %v379, %v374
    %v490 = vpack.c.b16 %v380, %v375
    %v491 = vpack.c.b16 %v386, %v381
    %v492 = vpack.c.b16 %v387, %v382
    %v493 = vpack.c.b16 %v388, %v383
    %v494 = vpack.c.b16 %v389, %v384
    %v495 = vpack.c.b16 %v390, %v385
    %v496 = vpack.c.b16 %v396, %v391
    %v497 = vpack.c.b16 %v397, %v392
    %v498 = vpack.c.b16 %v398, %v393
    %v499 = vpack.c.b16 %v399, %v394
    %v500 = vpack.c.b16 %v400, %v395
    %v501 = vpack.c.b16 %v406, %v401
    %v502 = vpack.c.b16 %v407, %v402
    %v503 = vpack.c.b16 %v408, %v403
    %v504 = vpack.c.b16 %v409, %v404
    %v505 = vpack.c.b16 %v410, %v405
    %v506 = vpack.c.b16 %v416, %v411
    %v507 = vpack.c.b16 %v417, %v412
    %v508 = vpack.c.b16 %v418, %v413
    %v509 = vpack.c.b16 %v419, %v414
    %v510 = vpack.c.b16 %v420, %v415
    %v511 = vpack.c.b16 %v426, %v421
    %v512 = vpack.c.b16 %v427, %v422
    %v513 = vpack.c.b16 %v428, %v423
    %v514 = vpack.c.b16 %v429, %v424
    %v515 = vpack.c.b16 %v430, %v425
    %v516 = vpack.c.b16 %v436, %v431
    %v517 = vpack.c.b16 %v437, %v432
    %v518 = vpack.c.b16 %v438, %v433
    %v519 = vpack.c.b16 %v439, %v434
    %v520 = vpack.c.b16 %v440, %v435
    %601 = vmatprep.subr.bf16.mxu0 %v442
    %602 = vmatpush1.bf16.msra.mxu0 %v441
    %603 = vmatprep.subr.bf16.mxu0 %v447
    %604 = vmatpush1.bf16.msra.mxu0 %v446
    %605 = vmatprep.subr.bf16.mxu0 %v452
    %606 = vmatpush1.bf16.msra.mxu0 %v451
    %607 = vmatprep.subr.bf16.mxu0 %v457
    %608 = vmatpush1.bf16.msra.mxu0 %v456
    %609 = vmatprep.subr.bf16.mxu0 %v462
    %610 = vmatpush1.bf16.msra.mxu0 %v461
    %611 = vmatprep.subr.bf16.mxu0 %v467
    %612 = vmatpush1.bf16.msra.mxu0 %v466
    %613 = vmatprep.subr.bf16.mxu0 %v472
    %614 = vmatpush1.bf16.msra.mxu0 %v471
    %615 = vmatprep.subr.bf16.mxu0 %v477
    %616 = vmatpush1.bf16.msra.mxu0 %v476
    %617 = vmatprep.subr.bf16.mxu0 %v482
    %618 = vmatpush1.bf16.msra.mxu0 %v481
    %619 = vmatprep.subr.bf16.mxu0 %v487
    %620 = vmatpush1.bf16.msra.mxu0 %v486
    %621 = vmatprep.subr.bf16.mxu0 %v492
    %622 = vmatpush1.bf16.msra.mxu0 %v491
    %623 = vmatprep.subr.bf16.mxu0 %v497
    %624 = vmatpush1.bf16.msra.mxu0 %v496
    %625 = vmatprep.subr.bf16.mxu0 %v502
    %626 = vmatpush1.bf16.msra.mxu0 %v501
    %627 = vmatprep.subr.bf16.mxu0 %v507
    %628 = vmatpush1.bf16.msra.mxu0 %v506
    %629 = vmatprep.subr.bf16.mxu0 %v512
    %630 = vmatpush1.bf16.msra.mxu0 %v511
    %631 = vmatprep.subr.bf16.mxu0 %v517
    %632 = vmatpush1.bf16.msra.mxu0 %v516
    %633 = vmatprep.mubr.bf16.mxu0 %v182
    %634 = vmatmul.mubr.bf16.gmra.mrb[0].mxu0 %v181
    %v635 = vpop.f32.mrb[0].mxu0
    %v636 = vadd.f32 0.0, %v635
    %v637 = vpop.f32.mrb[0].mxu0
    %v638 = vadd.f32 0.0, %v637
    %v639 = vpop.f32.mrb[0].mxu0
    %v640 = vpop.f32.mrb[0].mxu0
    %641 = vdwg.mxu0
    %642 = vmatprep.subr.bf16.mxu0 %v444
    %643 = vmatpush1.bf16.msra.mxu0 %v443
    %644 = vmatprep.subr.bf16.mxu0 %v449
    %645 = vmatpush1.bf16.msra.mxu0 %v448
    %646 = vmatprep.subr.bf16.mxu0 %v454
    %647 = vmatpush1.bf16.msra.mxu0 %v453
    %648 = vmatprep.subr.bf16.mxu0 %v459
    %649 = vmatpush1.bf16.msra.mxu0 %v458
    %650 = vmatprep.subr.bf16.mxu0 %v464
    %651 = vmatpush1.bf16.msra.mxu0 %v463
    %652 = vmatprep.subr.bf16.mxu0 %v469
    %653 = vmatpush1.bf16.msra.mxu0 %v468
    %654 = vmatprep.subr.bf16.mxu0 %v474
    %655 = vmatpush1.bf16.msra.mxu0 %v473
    %656 = vmatprep.subr.bf16.mxu0 %v479
    %657 = vmatpush1.bf16.msra.mxu0 %v478
    %658 = vmatprep.subr.bf16.mxu0 %v484
    %659 = vmatpush1.bf16.msra.mxu0 %v483
    %660 = vmatprep.subr.bf16.mxu0 %v489
    %661 = vmatpush1.bf16.msra.mxu0 %v488
    %662 = vmatprep.subr.bf16.mxu0 %v494
    %663 = vmatpush1.bf16.msra.mxu0 %v493
    %664 = vmatprep.subr.bf16.mxu0 %v499
    %665 = vmatpush1.bf16.msra.mxu0 %v498
    %666 = vmatprep.subr.bf16.mxu0 %v504
    %667 = vmatpush1.bf16.msra.mxu0 %v503
    %668 = vmatprep.subr.bf16.mxu0 %v509
    %669 = vmatpush1.bf16.msra.mxu0 %v508
    %670 = vmatprep.subr.bf16.mxu0 %v514
    %671 = vmatpush1.bf16.msra.mxu0 %v513
    %672 = vmatprep.subr.bf16.mxu0 %v519
    %673 = vmatpush1.bf16.msra.mxu0 %v518
    %674 = vmatprep.mubr.bf16.mxu0 %v182
    %675 = vmatmul.mubr.bf16.gmra.mrb[0].mxu0 %v181
    %v676 = vpop.f32.mrb[0].mxu0
    %v677 = vadd.f32 0.0, %v676
    %v678 = vpop.f32.mrb[0].mxu0
    %v679 = vadd.f32 0.0, %v678
    %v680 = vpop.f32.mrb[0].mxu0
    %v681 = vpop.f32.mrb[0].mxu0
    %682 = vdwg.mxu0
    %683 = vmatprep.subr.bf16.mxu0 0
    %684 = vmatpush1.bf16.msra.mxu0 %v445
    %685 = vmatprep.subr.bf16.mxu0 0
    %686 = vmatpush1.bf16.msra.mxu0 %v450
    %687 = vmatprep.subr.bf16.mxu0 0
    %688 = vmatpush1.bf16.msra.mxu0 %v455
    %689 = vmatprep.subr.bf16.mxu0 0
    %690 = vmatpush1.bf16.msra.mxu0 %v460
    %691 = vmatprep.subr.bf16.mxu0 0
    %692 = vmatpush1.bf16.msra.mxu0 %v465
    %693 = vmatprep.subr.bf16.mxu0 0
    %694 = vmatpush1.bf16.msra.mxu0 %v470
    %695 = vmatprep.subr.bf16.mxu0 0
    %696 = vmatpush1.bf16.msra.mxu0 %v475
    %697 = vmatprep.subr.bf16.mxu0 0
    %698 = vmatpush1.bf16.msra.mxu0 %v480
    %699 = vmatprep.subr.bf16.mxu0 0
    %700 = vmatpush1.bf16.msra.mxu0 %v485
    %701 = vmatprep.subr.bf16.mxu0 0
    %702 = vmatpush1.bf16.msra.mxu0 %v490
    %703 = vmatprep.subr.bf16.mxu0 0
    %704 = vmatpush1.bf16.msra.mxu0 %v495
    %705 = vmatprep.subr.bf16.mxu0 0
    %706 = vmatpush1.bf16.msra.mxu0 %v500
    %707 = vmatprep.subr.bf16.mxu0 0
    %708 = vmatpush1.bf16.msra.mxu0 %v505
    %709 = vmatprep.subr.bf16.mxu0 0
    %710 = vmatpush1.bf16.msra.mxu0 %v510
    %711 = vmatprep.subr.bf16.mxu0 0
    %712 = vmatpush1.bf16.msra.mxu0 %v515
    %713 = vmatprep.subr.bf16.mxu0 0
    %714 = vmatpush1.bf16.msra.mxu0 %v520
    %715 = vmatprep.mubr.bf16.mxu0 %v182
    %716 = vmatmul.mubr.bf16.gmra.mrb[0].mxu0 %v181
    %v717 = vpop.f32.mrb[0].mxu0
    %v718 = vadd.f32 0.0, %v717
    %v719 = vpop.f32.mrb[0].mxu0
    %v720 = vpop.f32.mrb[0].mxu0
    %v721 = vpop.f32.mrb[0].mxu0
    %722 = vdwg.mxu0
    %v723 = vpack.c.bf16 %v636, %v636
    %v724 = vpack.c.bf16 %v638, %v638
    %v725 = vpack.c.bf16 %v677, %v677
    %v726 = vpack.c.bf16 %v679, %v679
    %v727 = vpack.c.bf16 %v718, %v718
    %v728 = vld [vmem:[%s2] sm:$0x1f]
    %v730 = vcombine.high %v728, %v728
    %v732 = vunpack.c.l.s4 1966171168
    %v733 = vunpack.c.0.s8 %v732
    %v734 = vlaneseq
    %v735 = vshrl.u32 %v734, 7
    %v736 = vsub.s32 %v733, %v735
    %v737 = vrot.slane %v728, %v736
    %v739 = vunpack.c.l.s4 1966171168
    %v740 = vunpack.c.0.s8 %v739
    %v741 = vlaneseq
    %v742 = vshrl.u32 %v741, 7
    %v743 = vsub.s32 %v740, %v742
    %v744 = vrot.slane %v730, %v743
    %v745 = vcombine.high %v737, %v737
    %v747 = vunpack.c.l.s4 1966171168
    %v748 = vunpack.c.0.s8 %v747
    %v749 = vlaneseq
    %v750 = vshrl.u32 %v749, 7
    %v751 = vsub.s32 %v748, %v750
    %v752 = vrot.slane %v737, %v751
    %v754 = vunpack.c.l.s4 1966171168
    %v755 = vunpack.c.0.s8 %v754
    %v756 = vlaneseq
    %v757 = vshrl.u32 %v756, 7
    %v758 = vsub.s32 %v755, %v757
    %v759 = vrot.slane %v744, %v758
    %v761 = vunpack.c.l.s4 1966171168
    %v762 = vunpack.c.0.s8 %v761
    %v763 = vlaneseq
    %v764 = vshrl.u32 %v763, 7
    %v765 = vsub.s32 %v762, %v764
    %v766 = vrot.slane %v745, %v765
    %v767 = vcombine.high %v752, %v752
    %v768 = vcombine.high %v766, %v766
    %v770 = vpack.i.b16 %v752, %v752
    %v772 = vlaneseq
    %v773 = vshrl.u32 %v772, 7
    %v774 = vsub.s32 0, %v773
    %v775 = vrot.slane %v770, %v774
    %v777 = vpack.i.b16 %v766, %v766
    %v779 = vlaneseq
    %v780 = vshrl.u32 %v779, 7
    %v781 = vsub.s32 0, %v780
    %v782 = vrot.slane %v777, %v781
    %v784 = vpack.i.b16 %v767, %v767
    %v786 = vlaneseq
    %v787 = vshrl.u32 %v786, 7
    %v788 = vsub.s32 0, %v787
    %v789 = vrot.slane %v784, %v788
    %v791 = vpack.i.b16 %v768, %v768
    %v793 = vlaneseq
    %v794 = vshrl.u32 %v793, 7
    %v795 = vsub.s32 0, %v794
    %v796 = vrot.slane %v791, %v795
    %v798 = vpack.i.b16 %v759, %v759
    %v800 = vlaneseq
    %v801 = vshrl.u32 %v800, 7
    %v802 = vsub.s32 0, %v801
    %v803 = vrot.slane %v798, %v802
    %v804 = vadd.bf16 %v723, %v775
    %v805 = vadd.bf16 %v724, %v782
    %v806 = vadd.bf16 %v725, %v789
    %v807 = vadd.bf16 %v726, %v796
    %v808 = vadd.bf16 %v727, %v803
    %v809 = vmax.bf16 %v804, 0
    %v810 = vmax.bf16 %v805, 0
    %v811 = vmax.bf16 %v806, 0
    %v812 = vmax.bf16 %v807, 0
    %v813 = vmax.bf16 %v808, 0
    %v814 = vld [vmem:[#allocation7] sm:$0xff]
    %v815 = vld [vmem:[#allocation7 + $0x8] sm:$0xf]
    %v816 = vld [vmem:[#allocation7 + $0xc] sm:$0xff]
    %v817 = vld [vmem:[#allocation7 + $0x14] sm:$0xf]
    %v818 = vld [vmem:[#allocation7 + $0x18] sm:$0xff]
    %v819 = vld [vmem:[#allocation7 + $0x20] sm:$0xf]
    %v820 = vld [vmem:[#allocation7 + $0x24] sm:$0xff]
    %v821 = vld [vmem:[#allocation7 + $0x2c] sm:$0xf]
    %v822 = vld [vmem:[#allocation7 + $0x30] sm:$0xff]
    %v823 = vld [vmem:[#allocation7 + $0x38] sm:$0xf]
    %v824 = vld [vmem:[#allocation7 + $0x3c] sm:$0xff]
    %v825 = vld [vmem:[#allocation7 + $0x44] sm:$0xf]
    %v826 = vld [vmem:[#allocation7 + $0x48] sm:$0xff]
    %v827 = vld [vmem:[#allocation7 + $0x50] sm:$0xf]
    %v828 = vld [vmem:[#allocation7 + $0x54] sm:$0xff]
    %v829 = vld [vmem:[#allocation7 + $0x5c] sm:$0xf]
    %v830 = vld [vmem:[#allocation7 + $0x60] sm:$0xff]
    %v831 = vld [vmem:[#allocation7 + $0x68] sm:$0xf]
    %v832 = vld [vmem:[#allocation7 + $0x6c] sm:$0xff]
    %v833 = vld [vmem:[#allocation7 + $0x74] sm:$0xf]
    %v834 = vld [vmem:[#allocation7 + $0x78] sm:$0xff]
    %v835 = vld [vmem:[#allocation7 + $0x80] sm:$0xf]
    %v836 = vld [vmem:[#allocation7 + $0x84] sm:$0xff]
    %v837 = vld [vmem:[#allocation7 + $0x8c] sm:$0xf]
    %v838 = vld [vmem:[#allocation7 + $0x90] sm:$0xff]
    %v839 = vld [vmem:[#allocation7 + $0x98] sm:$0xf]
    %v840 = vld [vmem:[#allocation7 + $0x9c] sm:$0xff]
    %v841 = vld [vmem:[#allocation7 + $0xa4] sm:$0xf]
    %v842 = vld [vmem:[#allocation7 + $0xa8] sm:$0xff]
    %v843 = vld [vmem:[#allocation7 + $0xb0] sm:$0xf]
    %v844 = vld [vmem:[#allocation7 + $0xb4] sm:$0xff]
    %v845 = vld [vmem:[#allocation7 + $0xbc] sm:$0xf]
    %v846 = vld [vmem:[#allocation7 + $0xc0] sm:$0xff]
    %v847 = vld [vmem:[#allocation7 + $0xc8] sm:$0xf]
    %v848 = vld [vmem:[#allocation7 + $0xcc] sm:$0xff]
    %v849 = vld [vmem:[#allocation7 + $0xd4] sm:$0xf]
    %v850 = vld [vmem:[#allocation7 + $0xd8] sm:$0xff]
    %v851 = vld [vmem:[#allocation7 + $0xe0] sm:$0xf]
    %v852 = vld [vmem:[#allocation7 + $0xe4] sm:$0xff]
    %v853 = vld [vmem:[#allocation7 + $0xec] sm:$0xf]
    %v854 = vld [vmem:[#allocation7 + $0xf0] sm:$0xff]
    %v855 = vld [vmem:[#allocation7 + $0xf8] sm:$0xf]
    %v856 = vld [vmem:[#allocation7 + $0xfc] sm:$0xff]
    %v857 = vld [vmem:[#allocation7 + $0x104] sm:$0xf]
    %v858 = vld [vmem:[#allocation7 + $0x108] sm:$0xff]
    %v859 = vld [vmem:[#allocation7 + $0x110] sm:$0xf]
    %v860 = vld [vmem:[#allocation7 + $0x114] sm:$0xff]
    %v861 = vld [vmem:[#allocation7 + $0x11c] sm:$0xf]
    %v862 = vld [vmem:[#allocation7 + $0x120] sm:$0xff]
    %v863 = vld [vmem:[#allocation7 + $0x128] sm:$0xf]
    %v864 = vld [vmem:[#allocation7 + $0x12c] sm:$0xff]
    %v865 = vld [vmem:[#allocation7 + $0x134] sm:$0xf]
    %v866 = vld [vmem:[#allocation7 + $0x138] sm:$0xff]
    %v867 = vld [vmem:[#allocation7 + $0x140] sm:$0xf]
    %v868 = vld [vmem:[#allocation7 + $0x144] sm:$0xff]
    %v869 = vld [vmem:[#allocation7 + $0x14c] sm:$0xf]
    %v870 = vld [vmem:[#allocation7 + $0x150] sm:$0xff]
    %v871 = vld [vmem:[#allocation7 + $0x158] sm:$0xf]
    %v872 = vld [vmem:[#allocation7 + $0x15c] sm:$0xff]
    %v873 = vld [vmem:[#allocation7 + $0x164] sm:$0xf]
    %v874 = vld [vmem:[#allocation7 + $0x168] sm:$0xff]
    %v875 = vld [vmem:[#allocation7 + $0x170] sm:$0xf]
    %v876 = vld [vmem:[#allocation7 + $0x174] sm:$0xff]
    %v877 = vld [vmem:[#allocation7 + $0x17c] sm:$0xf]
    %v878 = vld [vmem:[#allocation7 + $0x180] sm:$0xff]
    %v879 = vld [vmem:[#allocation7 + $0x188] sm:$0xf]
    %v880 = vld [vmem:[#allocation7 + $0x18c] sm:$0xff]
    %v881 = vld [vmem:[#allocation7 + $0x194] sm:$0xf]
    %v882 = vld [vmem:[#allocation7 + $0x198] sm:$0xff]
    %v883 = vld [vmem:[#allocation7 + $0x1a0] sm:$0xf]
    %v884 = vld [vmem:[#allocation7 + $0x1a4] sm:$0xff]
    %v885 = vld [vmem:[#allocation7 + $0x1ac] sm:$0xf]
    %v886 = vld [vmem:[#allocation7 + $0x1b0] sm:$0xff]
    %v887 = vld [vmem:[#allocation7 + $0x1b8] sm:$0xf]
    %v888 = vld [vmem:[#allocation7 + $0x1bc] sm:$0xff]
    %v889 = vld [vmem:[#allocation7 + $0x1c4] sm:$0xf]
    %v890 = vld [vmem:[#allocation7 + $0x1c8] sm:$0xff]
    %v891 = vld [vmem:[#allocation7 + $0x1d0] sm:$0xf]
    %v892 = vld [vmem:[#allocation7 + $0x1d4] sm:$0xff]
    %v893 = vld [vmem:[#allocation7 + $0x1dc] sm:$0xf]
    %v894 = vld [vmem:[#allocation7 + $0x1e0] sm:$0xff]
    %v895 = vld [vmem:[#allocation7 + $0x1e8] sm:$0xf]
    %v896 = vld [vmem:[#allocation7 + $0x1ec] sm:$0xff]
    %v897 = vld [vmem:[#allocation7 + $0x1f4] sm:$0xf]
    %v898 = vld [vmem:[#allocation7 + $0x1f8] sm:$0xff]
    %v899 = vld [vmem:[#allocation7 + $0x200] sm:$0xf]
    %v900 = vld [vmem:[#allocation7 + $0x204] sm:$0xff]
    %v901 = vld [vmem:[#allocation7 + $0x20c] sm:$0xf]
    %v902 = vld [vmem:[#allocation7 + $0x210] sm:$0xff]
    %v903 = vld [vmem:[#allocation7 + $0x218] sm:$0xf]
    %v904 = vld [vmem:[#allocation7 + $0x21c] sm:$0xff]
    %v905 = vld [vmem:[#allocation7 + $0x224] sm:$0xf]
    %v906 = vld [vmem:[#allocation7 + $0x228] sm:$0xff]
    %v907 = vld [vmem:[#allocation7 + $0x230] sm:$0xf]
    %v908 = vld [vmem:[#allocation7 + $0x234] sm:$0xff]
    %v909 = vld [vmem:[#allocation7 + $0x23c] sm:$0xf]
    %v910 = vld [vmem:[#allocation7 + $0x240] sm:$0xff]
    %v911 = vld [vmem:[#allocation7 + $0x248] sm:$0xf]
    %v912 = vld [vmem:[#allocation7 + $0x24c] sm:$0xff]
    %v913 = vld [vmem:[#allocation7 + $0x254] sm:$0xf]
    %v914 = vld [vmem:[#allocation7 + $0x258] sm:$0xff]
    %v915 = vld [vmem:[#allocation7 + $0x260] sm:$0xf]
    %v916 = vld [vmem:[#allocation7 + $0x264] sm:$0xff]
    %v917 = vld [vmem:[#allocation7 + $0x26c] sm:$0xf]
    %v918 = vld [vmem:[#allocation7 + $0x270] sm:$0xff]
    %v919 = vld [vmem:[#allocation7 + $0x278] sm:$0xf]
    %v920 = vld [vmem:[#allocation7 + $0x27c] sm:$0xff]
    %v921 = vld [vmem:[#allocation7 + $0x284] sm:$0xf]
    %v922 = vld [vmem:[#allocation7 + $0x288] sm:$0xff]
    %v923 = vld [vmem:[#allocation7 + $0x290] sm:$0xf]
    %v924 = vld [vmem:[#allocation7 + $0x294] sm:$0xff]
    %v925 = vld [vmem:[#allocation7 + $0x29c] sm:$0xf]
    %v926 = vld [vmem:[#allocation7 + $0x2a0] sm:$0xff]
    %v927 = vld [vmem:[#allocation7 + $0x2a8] sm:$0xf]
    %v928 = vld [vmem:[#allocation7 + $0x2ac] sm:$0xff]
    %v929 = vld [vmem:[#allocation7 + $0x2b4] sm:$0xf]
    %v930 = vld [vmem:[#allocation7 + $0x2b8] sm:$0xff]
    %v931 = vld [vmem:[#allocation7 + $0x2c0] sm:$0xf]
    %v932 = vld [vmem:[#allocation7 + $0x2c4] sm:$0xff]
    %v933 = vld [vmem:[#allocation7 + $0x2cc] sm:$0xf]
    %v934 = vld [vmem:[#allocation7 + $0x2d0] sm:$0xff]
    %v935 = vld [vmem:[#allocation7 + $0x2d8] sm:$0xf]
    %v936 = vld [vmem:[#allocation7 + $0x2dc] sm:$0xff]
    %v937 = vld [vmem:[#allocation7 + $0x2e4] sm:$0xf]
    %v938 = vld [vmem:[#allocation7 + $0x2e8] sm:$0xff]
    %v939 = vld [vmem:[#allocation7 + $0x2f0] sm:$0xf]
    %v940 = vld [vmem:[#allocation7 + $0x2f4] sm:$0xff]
    %v941 = vld [vmem:[#allocation7 + $0x2fc] sm:$0xf]
    %v942 = vld [vmem:[#allocation7 + $0x300] sm:$0xff]
    %v943 = vld [vmem:[#allocation7 + $0x308] sm:$0xf]
    %v944 = vld [vmem:[#allocation7 + $0x30c] sm:$0xff]
    %v945 = vld [vmem:[#allocation7 + $0x314] sm:$0xf]
    %v946 = vld [vmem:[#allocation7 + $0x318] sm:$0xff]
    %v947 = vld [vmem:[#allocation7 + $0x320] sm:$0xf]
    %v948 = vld [vmem:[#allocation7 + $0x324] sm:$0xff]
    %v949 = vld [vmem:[#allocation7 + $0x32c] sm:$0xf]
    %v950 = vld [vmem:[#allocation7 + $0x330] sm:$0xff]
    %v951 = vld [vmem:[#allocation7 + $0x338] sm:$0xf]
    %v952 = vld [vmem:[#allocation7 + $0x33c] sm:$0xff]
    %v953 = vld [vmem:[#allocation7 + $0x344] sm:$0xf]
    %v954 = vld [vmem:[#allocation7 + $0x348] sm:$0xff]
    %v955 = vld [vmem:[#allocation7 + $0x350] sm:$0xf]
    %v956 = vld [vmem:[#allocation7 + $0x354] sm:$0xff]
    %v957 = vld [vmem:[#allocation7 + $0x35c] sm:$0xf]
    %v958 = vld [vmem:[#allocation7 + $0x360] sm:$0xff]
    %v959 = vld [vmem:[#allocation7 + $0x368] sm:$0xf]
    %v960 = vld [vmem:[#allocation7 + $0x36c] sm:$0xff]
    %v961 = vld [vmem:[#allocation7 + $0x374] sm:$0xf]
    %v962 = vld [vmem:[#allocation7 + $0x378] sm:$0xff]
    %v963 = vld [vmem:[#allocation7 + $0x380] sm:$0xf]
    %v964 = vld [vmem:[#allocation7 + $0x384] sm:$0xff]
    %v965 = vld [vmem:[#allocation7 + $0x38c] sm:$0xf]
    %v966 = vld [vmem:[#allocation7 + $0x390] sm:$0xff]
    %v967 = vld [vmem:[#allocation7 + $0x398] sm:$0xf]
    %v968 = vld [vmem:[#allocation7 + $0x39c] sm:$0xff]
    %v969 = vld [vmem:[#allocation7 + $0x3a4] sm:$0xf]
    %v970 = vld [vmem:[#allocation7 + $0x3a8] sm:$0xff]
    %v971 = vld [vmem:[#allocation7 + $0x3b0] sm:$0xf]
    %v972 = vld [vmem:[#allocation7 + $0x3b4] sm:$0xff]
    %v973 = vld [vmem:[#allocation7 + $0x3bc] sm:$0xf]
    %v1134 = vunpack.c.l.b16 %v814
    %v1135 = vunpack.c.h.b16 %v814
    %v1136 = vunpack.c.l.b16 %v815
    %v1137 = vunpack.c.l.b16 %v816
    %v1138 = vunpack.c.h.b16 %v816
    %v1139 = vunpack.c.l.b16 %v817
    %v1140 = vunpack.c.l.b16 %v818
    %v1141 = vunpack.c.h.b16 %v818
    %v1142 = vunpack.c.l.b16 %v819
    %v1143 = vunpack.c.l.b16 %v820
    %v1144 = vunpack.c.h.b16 %v820
    %v1145 = vunpack.c.l.b16 %v821
    %v1146 = vunpack.c.l.b16 %v822
    %v1147 = vunpack.c.h.b16 %v822
    %v1148 = vunpack.c.l.b16 %v823
    %v1149 = vunpack.c.l.b16 %v824
    %v1150 = vunpack.c.h.b16 %v824
    %v1151 = vunpack.c.l.b16 %v825
    %v1152 = vunpack.c.l.b16 %v826
    %v1153 = vunpack.c.h.b16 %v826
    %v1154 = vunpack.c.l.b16 %v827
    %v1155 = vunpack.c.l.b16 %v828
    %v1156 = vunpack.c.h.b16 %v828
    %v1157 = vunpack.c.l.b16 %v829
    %v1158 = vunpack.c.l.b16 %v830
    %v1159 = vunpack.c.h.b16 %v830
    %v1160 = vunpack.c.l.b16 %v831
    %v1161 = vunpack.c.l.b16 %v832
    %v1162 = vunpack.c.h.b16 %v832
    %v1163 = vunpack.c.l.b16 %v833
    %v1164 = vunpack.c.l.b16 %v834
    %v1165 = vunpack.c.h.b16 %v834
    %v1166 = vunpack.c.l.b16 %v835
    %v1167 = vunpack.c.l.b16 %v836
    %v1168 = vunpack.c.h.b16 %v836
    %v1169 = vunpack.c.l.b16 %v837
    %v1170 = vunpack.c.l.b16 %v838
    %v1171 = vunpack.c.h.b16 %v838
    %v1172 = vunpack.c.l.b16 %v839
    %v1173 = vunpack.c.l.b16 %v840
    %v1174 = vunpack.c.h.b16 %v840
    %v1175 = vunpack.c.l.b16 %v841
    %v1176 = vunpack.c.l.b16 %v842
    %v1177 = vunpack.c.h.b16 %v842
    %v1178 = vunpack.c.l.b16 %v843
    %v1179 = vunpack.c.l.b16 %v844
    %v1180 = vunpack.c.h.b16 %v844
    %v1181 = vunpack.c.l.b16 %v845
    %v1182 = vunpack.c.l.b16 %v846
    %v1183 = vunpack.c.h.b16 %v846
    %v1184 = vunpack.c.l.b16 %v847
    %v1185 = vunpack.c.l.b16 %v848
    %v1186 = vunpack.c.h.b16 %v848
    %v1187 = vunpack.c.l.b16 %v849
    %v1188 = vunpack.c.l.b16 %v850
    %v1189 = vunpack.c.h.b16 %v850
    %v1190 = vunpack.c.l.b16 %v851
    %v1191 = vunpack.c.l.b16 %v852
    %v1192 = vunpack.c.h.b16 %v852
    %v1193 = vunpack.c.l.b16 %v853
    %v1194 = vunpack.c.l.b16 %v854
    %v1195 = vunpack.c.h.b16 %v854
    %v1196 = vunpack.c.l.b16 %v855
    %v1197 = vunpack.c.l.b16 %v856
    %v1198 = vunpack.c.h.b16 %v856
    %v1199 = vunpack.c.l.b16 %v857
    %v1200 = vunpack.c.l.b16 %v858
    %v1201 = vunpack.c.h.b16 %v858
    %v1202 = vunpack.c.l.b16 %v859
    %v1203 = vunpack.c.l.b16 %v860
    %v1204 = vunpack.c.h.b16 %v860
    %v1205 = vunpack.c.l.b16 %v861
    %v1206 = vunpack.c.l.b16 %v862
    %v1207 = vunpack.c.h.b16 %v862
    %v1208 = vunpack.c.l.b16 %v863
    %v1209 = vunpack.c.l.b16 %v864
    %v1210 = vunpack.c.h.b16 %v864
    %v1211 = vunpack.c.l.b16 %v865
    %v1212 = vunpack.c.l.b16 %v866
    %v1213 = vunpack.c.h.b16 %v866
    %v1214 = vunpack.c.l.b16 %v867
    %v1215 = vunpack.c.l.b16 %v868
    %v1216 = vunpack.c.h.b16 %v868
    %v1217 = vunpack.c.l.b16 %v869
    %v1218 = vunpack.c.l.b16 %v870
    %v1219 = vunpack.c.h.b16 %v870
    %v1220 = vunpack.c.l.b16 %v871
    %v1221 = vunpack.c.l.b16 %v872
    %v1222 = vunpack.c.h.b16 %v872
    %v1223 = vunpack.c.l.b16 %v873
    %v1224 = vunpack.c.l.b16 %v874
    %v1225 = vunpack.c.h.b16 %v874
    %v1226 = vunpack.c.l.b16 %v875
    %v1227 = vunpack.c.l.b16 %v876
    %v1228 = vunpack.c.h.b16 %v876
    %v1229 = vunpack.c.l.b16 %v877
    %v1230 = vunpack.c.l.b16 %v878
    %v1231 = vunpack.c.h.b16 %v878
    %v1232 = vunpack.c.l.b16 %v879
    %v1233 = vunpack.c.l.b16 %v880
    %v1234 = vunpack.c.h.b16 %v880
    %v1235 = vunpack.c.l.b16 %v881
    %v1236 = vunpack.c.l.b16 %v882
    %v1237 = vunpack.c.h.b16 %v882
    %v1238 = vunpack.c.l.b16 %v883
    %v1239 = vunpack.c.l.b16 %v884
    %v1240 = vunpack.c.h.b16 %v884
    %v1241 = vunpack.c.l.b16 %v885
    %v1242 = vunpack.c.l.b16 %v886
    %v1243 = vunpack.c.h.b16 %v886
    %v1244 = vunpack.c.l.b16 %v887
    %v1245 = vunpack.c.l.b16 %v888
    %v1246 = vunpack.c.h.b16 %v888
    %v1247 = vunpack.c.l.b16 %v889
    %v1248 = vunpack.c.l.b16 %v890
    %v1249 = vunpack.c.h.b16 %v890
    %v1250 = vunpack.c.l.b16 %v891
    %v1251 = vunpack.c.l.b16 %v892
    %v1252 = vunpack.c.h.b16 %v892
    %v1253 = vunpack.c.l.b16 %v893
    %v1254 = vunpack.c.l.b16 %v894
    %v1255 = vunpack.c.h.b16 %v894
    %v1256 = vunpack.c.l.b16 %v895
    %v1257 = vunpack.c.l.b16 %v896
    %v1258 = vunpack.c.h.b16 %v896
    %v1259 = vunpack.c.l.b16 %v897
    %v1260 = vunpack.c.l.b16 %v898
    %v1261 = vunpack.c.h.b16 %v898
    %v1262 = vunpack.c.l.b16 %v899
    %v1263 = vunpack.c.l.b16 %v900
    %v1264 = vunpack.c.h.b16 %v900
    %v1265 = vunpack.c.l.b16 %v901
    %v1266 = vunpack.c.l.b16 %v902
    %v1267 = vunpack.c.h.b16 %v902
    %v1268 = vunpack.c.l.b16 %v903
    %v1269 = vunpack.c.l.b16 %v904
    %v1270 = vunpack.c.h.b16 %v904
    %v1271 = vunpack.c.l.b16 %v905
    %v1272 = vunpack.c.l.b16 %v906
    %v1273 = vunpack.c.h.b16 %v906
    %v1274 = vunpack.c.l.b16 %v907
    %v1275 = vunpack.c.l.b16 %v908
    %v1276 = vunpack.c.h.b16 %v908
    %v1277 = vunpack.c.l.b16 %v909
    %v1278 = vunpack.c.l.b16 %v910
    %v1279 = vunpack.c.h.b16 %v910
    %v1280 = vunpack.c.l.b16 %v911
    %v1281 = vunpack.c.l.b16 %v912
    %v1282 = vunpack.c.h.b16 %v912
    %v1283 = vunpack.c.l.b16 %v913
    %v1284 = vunpack.c.l.b16 %v914
    %v1285 = vunpack.c.h.b16 %v914
    %v1286 = vunpack.c.l.b16 %v915
    %v1287 = vunpack.c.l.b16 %v916
    %v1288 = vunpack.c.h.b16 %v916
    %v1289 = vunpack.c.l.b16 %v917
    %v1290 = vunpack.c.l.b16 %v918
    %v1291 = vunpack.c.h.b16 %v918
    %v1292 = vunpack.c.l.b16 %v919
    %v1293 = vunpack.c.l.b16 %v920
    %v1294 = vunpack.c.h.b16 %v920
    %v1295 = vunpack.c.l.b16 %v921
    %v1296 = vunpack.c.l.b16 %v922
    %v1297 = vunpack.c.h.b16 %v922
    %v1298 = vunpack.c.l.b16 %v923
    %v1299 = vunpack.c.l.b16 %v924
    %v1300 = vunpack.c.h.b16 %v924
    %v1301 = vunpack.c.l.b16 %v925
    %v1302 = vunpack.c.l.b16 %v926
    %v1303 = vunpack.c.h.b16 %v926
    %v1304 = vunpack.c.l.b16 %v927
    %v1305 = vunpack.c.l.b16 %v928
    %v1306 = vunpack.c.h.b16 %v928
    %v1307 = vunpack.c.l.b16 %v929
    %v1308 = vunpack.c.l.b16 %v930
    %v1309 = vunpack.c.h.b16 %v930
    %v1310 = vunpack.c.l.b16 %v931
    %v1311 = vunpack.c.l.b16 %v932
    %v1312 = vunpack.c.h.b16 %v932
    %v1313 = vunpack.c.l.b16 %v933
    %v1314 = vunpack.c.l.b16 %v934
    %v1315 = vunpack.c.h.b16 %v934
    %v1316 = vunpack.c.l.b16 %v935
    %v1317 = vunpack.c.l.b16 %v936
    %v1318 = vunpack.c.h.b16 %v936
    %v1319 = vunpack.c.l.b16 %v937
    %v1320 = vunpack.c.l.b16 %v938
    %v1321 = vunpack.c.h.b16 %v938
    %v1322 = vunpack.c.l.b16 %v939
    %v1323 = vunpack.c.l.b16 %v940
    %v1324 = vunpack.c.h.b16 %v940
    %v1325 = vunpack.c.l.b16 %v941
    %v1326 = vunpack.c.l.b16 %v942
    %v1327 = vunpack.c.h.b16 %v942
    %v1328 = vunpack.c.l.b16 %v943
    %v1329 = vunpack.c.l.b16 %v944
    %v1330 = vunpack.c.h.b16 %v944
    %v1331 = vunpack.c.l.b16 %v945
    %v1332 = vunpack.c.l.b16 %v946
    %v1333 = vunpack.c.h.b16 %v946
    %v1334 = vunpack.c.l.b16 %v947
    %v1335 = vunpack.c.l.b16 %v948
    %v1336 = vunpack.c.h.b16 %v948
    %v1337 = vunpack.c.l.b16 %v949
    %v1338 = vunpack.c.l.b16 %v950
    %v1339 = vunpack.c.h.b16 %v950
    %v1340 = vunpack.c.l.b16 %v951
    %v1341 = vunpack.c.l.b16 %v952
    %v1342 = vunpack.c.h.b16 %v952
    %v1343 = vunpack.c.l.b16 %v953
    %v1344 = vunpack.c.l.b16 %v954
    %v1345 = vunpack.c.h.b16 %v954
    %v1346 = vunpack.c.l.b16 %v955
    %v1347 = vunpack.c.l.b16 %v956
    %v1348 = vunpack.c.h.b16 %v956
    %v1349 = vunpack.c.l.b16 %v957
    %v1350 = vunpack.c.l.b16 %v958
    %v1351 = vunpack.c.h.b16 %v958
    %v1352 = vunpack.c.l.b16 %v959
    %v1353 = vunpack.c.l.b16 %v960
    %v1354 = vunpack.c.h.b16 %v960
    %v1355 = vunpack.c.l.b16 %v961
    %v1356 = vunpack.c.l.b16 %v962
    %v1357 = vunpack.c.h.b16 %v962
    %v1358 = vunpack.c.l.b16 %v963
    %v1359 = vunpack.c.l.b16 %v964
    %v1360 = vunpack.c.h.b16 %v964
    %v1361 = vunpack.c.l.b16 %v965
    %v1362 = vunpack.c.l.b16 %v966
    %v1363 = vunpack.c.h.b16 %v966
    %v1364 = vunpack.c.l.b16 %v967
    %v1365 = vunpack.c.l.b16 %v968
    %v1366 = vunpack.c.h.b16 %v968
    %v1367 = vunpack.c.l.b16 %v969
    %v1368 = vunpack.c.l.b16 %v970
    %v1369 = vunpack.c.h.b16 %v970
    %v1370 = vunpack.c.l.b16 %v971
    %v1371 = vunpack.c.l.b16 %v972
    %v1372 = vunpack.c.h.b16 %v972
    %v1373 = vunpack.c.l.b16 %v973
    %v1374 = vpack.c.b16 %v1137, %v1134
    %v1375 = vpack.c.b16 %v1138, %v1135
    %v1376 = vpack.c.b16 %v1139, %v1136
    %v1377 = vpack.c.b16 %v1143, %v1140
    %v1378 = vpack.c.b16 %v1144, %v1141
    %v1379 = vpack.c.b16 %v1145, %v1142
    %v1380 = vpack.c.b16 %v1149, %v1146
    %v1381 = vpack.c.b16 %v1150, %v1147
    %v1382 = vpack.c.b16 %v1151, %v1148
    %v1383 = vpack.c.b16 %v1155, %v1152
    %v1384 = vpack.c.b16 %v1156, %v1153
    %v1385 = vpack.c.b16 %v1157, %v1154
    %v1386 = vpack.c.b16 %v1161, %v1158
    %v1387 = vpack.c.b16 %v1162, %v1159
    %v1388 = vpack.c.b16 %v1163, %v1160
    %v1389 = vpack.c.b16 %v1167, %v1164
    %v1390 = vpack.c.b16 %v1168, %v1165
    %v1391 = vpack.c.b16 %v1169, %v1166
    %v1392 = vpack.c.b16 %v1173, %v1170
    %v1393 = vpack.c.b16 %v1174, %v1171
    %v1394 = vpack.c.b16 %v1175, %v1172
    %v1395 = vpack.c.b16 %v1179, %v1176
    %v1396 = vpack.c.b16 %v1180, %v1177
    %v1397 = vpack.c.b16 %v1181, %v1178
    %v1398 = vpack.c.b16 %v1185, %v1182
    %v1399 = vpack.c.b16 %v1186, %v1183
    %v1400 = vpack.c.b16 %v1187, %v1184
    %v1401 = vpack.c.b16 %v1191, %v1188
    %v1402 = vpack.c.b16 %v1192, %v1189
    %v1403 = vpack.c.b16 %v1193, %v1190
    %v1404 = vpack.c.b16 %v1197, %v1194
    %v1405 = vpack.c.b16 %v1198, %v1195
    %v1406 = vpack.c.b16 %v1199, %v1196
    %v1407 = vpack.c.b16 %v1203, %v1200
    %v1408 = vpack.c.b16 %v1204, %v1201
    %v1409 = vpack.c.b16 %v1205, %v1202
    %v1410 = vpack.c.b16 %v1209, %v1206
    %v1411 = vpack.c.b16 %v1210, %v1207
    %v1412 = vpack.c.b16 %v1211, %v1208
    %v1413 = vpack.c.b16 %v1215, %v1212
    %v1414 = vpack.c.b16 %v1216, %v1213
    %v1415 = vpack.c.b16 %v1217, %v1214
    %v1416 = vpack.c.b16 %v1221, %v1218
    %v1417 = vpack.c.b16 %v1222, %v1219
    %v1418 = vpack.c.b16 %v1223, %v1220
    %v1419 = vpack.c.b16 %v1227, %v1224
    %v1420 = vpack.c.b16 %v1228, %v1225
    %v1421 = vpack.c.b16 %v1229, %v1226
    %v1422 = vpack.c.b16 %v1233, %v1230
    %v1423 = vpack.c.b16 %v1234, %v1231
    %v1424 = vpack.c.b16 %v1235, %v1232
    %v1425 = vpack.c.b16 %v1239, %v1236
    %v1426 = vpack.c.b16 %v1240, %v1237
    %v1427 = vpack.c.b16 %v1241, %v1238
    %v1428 = vpack.c.b16 %v1245, %v1242
    %v1429 = vpack.c.b16 %v1246, %v1243
    %v1430 = vpack.c.b16 %v1247, %v1244
    %v1431 = vpack.c.b16 %v1251, %v1248
    %v1432 = vpack.c.b16 %v1252, %v1249
    %v1433 = vpack.c.b16 %v1253, %v1250
    %v1434 = vpack.c.b16 %v1257, %v1254
    %v1435 = vpack.c.b16 %v1258, %v1255
    %v1436 = vpack.c.b16 %v1259, %v1256
    %v1437 = vpack.c.b16 %v1263, %v1260
    %v1438 = vpack.c.b16 %v1264, %v1261
    %v1439 = vpack.c.b16 %v1265, %v1262
    %v1440 = vpack.c.b16 %v1269, %v1266
    %v1441 = vpack.c.b16 %v1270, %v1267
    %v1442 = vpack.c.b16 %v1271, %v1268
    %v1443 = vpack.c.b16 %v1275, %v1272
    %v1444 = vpack.c.b16 %v1276, %v1273
    %v1445 = vpack.c.b16 %v1277, %v1274
    %v1446 = vpack.c.b16 %v1281, %v1278
    %v1447 = vpack.c.b16 %v1282, %v1279
    %v1448 = vpack.c.b16 %v1283, %v1280
    %v1449 = vpack.c.b16 %v1287, %v1284
    %v1450 = vpack.c.b16 %v1288, %v1285
    %v1451 = vpack.c.b16 %v1289, %v1286
    %v1452 = vpack.c.b16 %v1293, %v1290
    %v1453 = vpack.c.b16 %v1294, %v1291
    %v1454 = vpack.c.b16 %v1295, %v1292
    %v1455 = vpack.c.b16 %v1299, %v1296
    %v1456 = vpack.c.b16 %v1300, %v1297
    %v1457 = vpack.c.b16 %v1301, %v1298
    %v1458 = vpack.c.b16 %v1305, %v1302
    %v1459 = vpack.c.b16 %v1306, %v1303
    %v1460 = vpack.c.b16 %v1307, %v1304
    %v1461 = vpack.c.b16 %v1311, %v1308
    %v1462 = vpack.c.b16 %v1312, %v1309
    %v1463 = vpack.c.b16 %v1313, %v1310
    %v1464 = vpack.c.b16 %v1317, %v1314
    %v1465 = vpack.c.b16 %v1318, %v1315
    %v1466 = vpack.c.b16 %v1319, %v1316
    %v1467 = vpack.c.b16 %v1323, %v1320
    %v1468 = vpack.c.b16 %v1324, %v1321
    %v1469 = vpack.c.b16 %v1325, %v1322
    %v1470 = vpack.c.b16 %v1329, %v1326
    %v1471 = vpack.c.b16 %v1330, %v1327
    %v1472 = vpack.c.b16 %v1331, %v1328
    %v1473 = vpack.c.b16 %v1335, %v1332
    %v1474 = vpack.c.b16 %v1336, %v1333
    %v1475 = vpack.c.b16 %v1337, %v1334
    %v1476 = vpack.c.b16 %v1341, %v1338
    %v1477 = vpack.c.b16 %v1342, %v1339
    %v1478 = vpack.c.b16 %v1343, %v1340
    %v1479 = vpack.c.b16 %v1347, %v1344
    %v1480 = vpack.c.b16 %v1348, %v1345
    %v1481 = vpack.c.b16 %v1349, %v1346
    %v1482 = vpack.c.b16 %v1353, %v1350
    %v1483 = vpack.c.b16 %v1354, %v1351
    %v1484 = vpack.c.b16 %v1355, %v1352
    %v1485 = vpack.c.b16 %v1359, %v1356
    %v1486 = vpack.c.b16 %v1360, %v1357
    %v1487 = vpack.c.b16 %v1361, %v1358
    %v1488 = vpack.c.b16 %v1365, %v1362
    %v1489 = vpack.c.b16 %v1366, %v1363
    %v1490 = vpack.c.b16 %v1367, %v1364
    %v1491 = vpack.c.b16 %v1371, %v1368
    %v1492 = vpack.c.b16 %v1372, %v1369
    %v1493 = vpack.c.b16 %v1373, %v1370
    %1614 = vmatprep.subr.bf16.mxu0 %v1375
    %1615 = vmatpush1.bf16.msra.mxu0 %v1374
    %1616 = vmatprep.subr.bf16.mxu0 %v1378
    %1617 = vmatpush1.bf16.msra.mxu0 %v1377
    %1618 = vmatprep.subr.bf16.mxu0 %v1381
    %1619 = vmatpush1.bf16.msra.mxu0 %v1380
    %1620 = vmatprep.subr.bf16.mxu0 %v1384
    %1621 = vmatpush1.bf16.msra.mxu0 %v1383
    %1622 = vmatprep.subr.bf16.mxu0 %v1387
    %1623 = vmatpush1.bf16.msra.mxu0 %v1386
    %1624 = vmatprep.subr.bf16.mxu0 %v1390
    %1625 = vmatpush1.bf16.msra.mxu0 %v1389
    %1626 = vmatprep.subr.bf16.mxu0 %v1393
    %1627 = vmatpush1.bf16.msra.mxu0 %v1392
    %1628 = vmatprep.subr.bf16.mxu0 %v1396
    %1629 = vmatpush1.bf16.msra.mxu0 %v1395
    %1630 = vmatprep.subr.bf16.mxu0 %v1399
    %1631 = vmatpush1.bf16.msra.mxu0 %v1398
    %1632 = vmatprep.subr.bf16.mxu0 %v1402
    %1633 = vmatpush1.bf16.msra.mxu0 %v1401
    %1634 = vmatprep.subr.bf16.mxu0 %v1405
    %1635 = vmatpush1.bf16.msra.mxu0 %v1404
    %1636 = vmatprep.subr.bf16.mxu0 %v1408
    %1637 = vmatpush1.bf16.msra.mxu0 %v1407
    %1638 = vmatprep.subr.bf16.mxu0 %v1411
    %1639 = vmatpush1.bf16.msra.mxu0 %v1410
    %1640 = vmatprep.subr.bf16.mxu0 %v1414
    %1641 = vmatpush1.bf16.msra.mxu0 %v1413
    %1642 = vmatprep.subr.bf16.mxu0 %v1417
    %1643 = vmatpush1.bf16.msra.mxu0 %v1416
    %1644 = vmatprep.subr.bf16.mxu0 %v1420
    %1645 = vmatpush1.bf16.msra.mxu0 %v1419
    %1646 = vmatprep.mubr.bf16.mxu0 %v810
    %1647 = vmatmul.mubr.bf16.gmra.mrb[0].mxu0 %v809
    %v1648 = vpop.f32.mrb[0].mxu0
    %v1649 = vadd.f32 0.0, %v1648
    %v1650 = vpop.f32.mrb[0].mxu0
    %v1651 = vadd.f32 0.0, %v1650
    %v1652 = vpop.f32.mrb[0].mxu0
    %v1653 = vpop.f32.mrb[0].mxu0
    %1654 = vdwg.mxu0
    %1655 = vmatprep.subr.bf16.mxu0 %v1423
    %1656 = vmatpush1.bf16.msra.mxu0 %v1422
    %1657 = vmatprep.subr.bf16.mxu0 %v1426
    %1658 = vmatpush1.bf16.msra.mxu0 %v1425
    %1659 = vmatprep.subr.bf16.mxu0 %v1429
    %1660 = vmatpush1.bf16.msra.mxu0 %v1428
    %1661 = vmatprep.subr.bf16.mxu0 %v1432
    %1662 = vmatpush1.bf16.msra.mxu0 %v1431
    %1663 = vmatprep.subr.bf16.mxu0 %v1435
    %1664 = vmatpush1.bf16.msra.mxu0 %v1434
    %1665 = vmatprep.subr.bf16.mxu0 %v1438
    %1666 = vmatpush1.bf16.msra.mxu0 %v1437
    %1667 = vmatprep.subr.bf16.mxu0 %v1441
    %1668 = vmatpush1.bf16.msra.mxu0 %v1440
    %1669 = vmatprep.subr.bf16.mxu0 %v1444
    %1670 = vmatpush1.bf16.msra.mxu0 %v1443
    %1671 = vmatprep.subr.bf16.mxu0 %v1447
    %1672 = vmatpush1.bf16.msra.mxu0 %v1446
    %1673 = vmatprep.subr.bf16.mxu0 %v1450
    %1674 = vmatpush1.bf16.msra.mxu0 %v1449
    %1675 = vmatprep.subr.bf16.mxu0 %v1453
    %1676 = vmatpush1.bf16.msra.mxu0 %v1452
    %1677 = vmatprep.subr.bf16.mxu0 %v1456
    %1678 = vmatpush1.bf16.msra.mxu0 %v1455
    %1679 = vmatprep.subr.bf16.mxu0 %v1459
    %1680 = vmatpush1.bf16.msra.mxu0 %v1458
    %1681 = vmatprep.subr.bf16.mxu0 %v1462
    %1682 = vmatpush1.bf16.msra.mxu0 %v1461
    %1683 = vmatprep.subr.bf16.mxu0 %v1465
    %1684 = vmatpush1.bf16.msra.mxu0 %v1464
    %1685 = vmatprep.subr.bf16.mxu0 %v1468
    %1686 = vmatpush1.bf16.msra.mxu0 %v1467
    %1687 = vmatprep.mubr.bf16.mxu0 %v812
    %1688 = vmatmul.mubr.bf16.gmra.mrb[0].mxu0 %v811
    %v1689 = vpop.f32.mrb[0].mxu0
    %v1690 = vadd.f32 %v1649, %v1689
    %v1691 = vpop.f32.mrb[0].mxu0
    %v1692 = vadd.f32 %v1651, %v1691
    %v1693 = vpop.f32.mrb[0].mxu0
    %v1694 = vpop.f32.mrb[0].mxu0
    %1695 = vdwg.mxu0
    %1696 = vmatprep.subr.bf16.mxu0 %v1471
    %1697 = vmatpush1.bf16.msra.mxu0 %v1470
    %1698 = vmatprep.subr.bf16.mxu0 %v1474
    %1699 = vmatpush1.bf16.msra.mxu0 %v1473
    %1700 = vmatprep.subr.bf16.mxu0 %v1477
    %1701 = vmatpush1.bf16.msra.mxu0 %v1476
    %1702 = vmatprep.subr.bf16.mxu0 %v1480
    %1703 = vmatpush1.bf16.msra.mxu0 %v1479
    %1704 = vmatprep.subr.bf16.mxu0 %v1483
    %1705 = vmatpush1.bf16.msra.mxu0 %v1482
    %1706 = vmatprep.subr.bf16.mxu0 %v1486
    %1707 = vmatpush1.bf16.msra.mxu0 %v1485
    %1708 = vmatprep.subr.bf16.mxu0 %v1489
    %1709 = vmatpush1.bf16.msra.mxu0 %v1488
    %1710 = vmatprep.subr.bf16.mxu0 %v1492
    %1711 = vmatpush1.bf16.msra.mxu0 %v1491
    %1712 = vmatprep.subr.bf16.mxu0 0
    %1713 = vmatpush1.bf16.msra.mxu0 0
    %1714 = vmatprep.subr.bf16.mxu0 0
    %1715 = vmatpush1.bf16.msra.mxu0 0
    %1716 = vmatprep.subr.bf16.mxu0 0
    %1717 = vmatpush1.bf16.msra.mxu0 0
    %1718 = vmatprep.subr.bf16.mxu0 0
    %1719 = vmatpush1.bf16.msra.mxu0 0
    %1720 = vmatprep.subr.bf16.mxu0 0
    %1721 = vmatpush1.bf16.msra.mxu0 0
    %1722 = vmatprep.subr.bf16.mxu0 0
    %1723 = vmatpush1.bf16.msra.mxu0 0
    %1724 = vmatprep.subr.bf16.mxu0 0
    %1725 = vmatpush1.bf16.msra.mxu0 0
    %1726 = vmatprep.subr.bf16.mxu0 0
    %1727 = vmatpush1.bf16.msra.mxu0 0
    %1728 = vmatprep.mubr.bf16.mxu0 0
    %1729 = vmatmul.mubr.bf16.gmra.mrb[0].mxu0 %v813
    %v1730 = vpop.f32.mrb[0].mxu0
    %v1731 = vadd.f32 %v1690, %v1730
    %v1732 = vpop.f32.mrb[0].mxu0
    %v1733 = vadd.f32 %v1692, %v1732
    %v1734 = vpop.f32.mrb[0].mxu0
    %v1735 = vpop.f32.mrb[0].mxu0
    %1736 = vdwg.mxu0
    %1737 = vmatprep.subr.bf16.mxu0 0
    %1738 = vmatpush1.bf16.msra.mxu0 %v1376
    %1739 = vmatprep.subr.bf16.mxu0 0
    %1740 = vmatpush1.bf16.msra.mxu0 %v1379
    %1741 = vmatprep.subr.bf16.mxu0 0
    %1742 = vmatpush1.bf16.msra.mxu0 %v1382
    %1743 = vmatprep.subr.bf16.mxu0 0
    %1744 = vmatpush1.bf16.msra.mxu0 %v1385
    %1745 = vmatprep.subr.bf16.mxu0 0
    %1746 = vmatpush1.bf16.msra.mxu0 %v1388
    %1747 = vmatprep.subr.bf16.mxu0 0
    %1748 = vmatpush1.bf16.msra.mxu0 %v1391
    %1749 = vmatprep.subr.bf16.mxu0 0
    %1750 = vmatpush1.bf16.msra.mxu0 %v1394
    %1751 = vmatprep.subr.bf16.mxu0 0
    %1752 = vmatpush1.bf16.msra.mxu0 %v1397
    %1753 = vmatprep.subr.bf16.mxu0 0
    %1754 = vmatpush1.bf16.msra.mxu0 %v1400
    %1755 = vmatprep.subr.bf16.mxu0 0
    %1756 = vmatpush1.bf16.msra.mxu0 %v1403
    %1757 = vmatprep.subr.bf16.mxu0 0
    %1758 = vmatpush1.bf16.msra.mxu0 %v1406
    %1759 = vmatprep.subr.bf16.mxu0 0
    %1760 = vmatpush1.bf16.msra.mxu0 %v1409
    %1761 = vmatprep.subr.bf16.mxu0 0
    %1762 = vmatpush1.bf16.msra.mxu0 %v1412
    %1763 = vmatprep.subr.bf16.mxu0 0
    %1764 = vmatpush1.bf16.msra.mxu0 %v1415
    %1765 = vmatprep.subr.bf16.mxu0 0
    %1766 = vmatpush1.bf16.msra.mxu0 %v1418
    %1767 = vmatprep.subr.bf16.mxu0 0
    %1768 = vmatpush1.bf16.msra.mxu0 %v1421
    %1769 = vmatprep.mubr.bf16.mxu0 %v810
    %1770 = vmatmul.mubr.bf16.gmra.mrb[0].mxu0 %v809
    %v1771 = vpop.f32.mrb[0].mxu0
    %v1772 = vadd.f32 0.0, %v1771
    %v1773 = vpop.f32.mrb[0].mxu0
    %v1774 = vpop.f32.mrb[0].mxu0
    %v1775 = vpop.f32.mrb[0].mxu0
    %1776 = vdwg.mxu0
    %1777 = vmatprep.subr.bf16.mxu0 0
    %1778 = vmatpush1.bf16.msra.mxu0 %v1424
    %1779 = vmatprep.subr.bf16.mxu0 0
    %1780 = vmatpush1.bf16.msra.mxu0 %v1427
    %1781 = vmatprep.subr.bf16.mxu0 0
    %1782 = vmatpush1.bf16.msra.mxu0 %v1430
    %1783 = vmatprep.subr.bf16.mxu0 0
    %1784 = vmatpush1.bf16.msra.mxu0 %v1433
    %1785 = vmatprep.subr.bf16.mxu0 0
    %1786 = vmatpush1.bf16.msra.mxu0 %v1436
    %1787 = vmatprep.subr.bf16.mxu0 0
    %1788 = vmatpush1.bf16.msra.mxu0 %v1439
    %1789 = vmatprep.subr.bf16.mxu0 0
    %1790 = vmatpush1.bf16.msra.mxu0 %v1442
    %1791 = vmatprep.subr.bf16.mxu0 0
    %1792 = vmatpush1.bf16.msra.mxu0 %v1445
    %1793 = vmatprep.subr.bf16.mxu0 0
    %1794 = vmatpush1.bf16.msra.mxu0 %v1448
    %1795 = vmatprep.subr.bf16.mxu0 0
    %1796 = vmatpush1.bf16.msra.mxu0 %v1451
    %1797 = vmatprep.subr.bf16.mxu0 0
    %1798 = vmatpush1.bf16.msra.mxu0 %v1454
    %1799 = vmatprep.subr.bf16.mxu0 0
    %1800 = vmatpush1.bf16.msra.mxu0 %v1457
    %1801 = vmatprep.subr.bf16.mxu0 0
    %1802 = vmatpush1.bf16.msra.mxu0 %v1460
    %1803 = vmatprep.subr.bf16.mxu0 0
    %1804 = vmatpush1.bf16.msra.mxu0 %v1463
    %1805 = vmatprep.subr.bf16.mxu0 0
    %1806 = vmatpush1.bf16.msra.mxu0 %v1466
    %1807 = vmatprep.subr.bf16.mxu0 0
    %1808 = vmatpush1.bf16.msra.mxu0 %v1469
    %1809 = vmatprep.mubr.bf16.mxu0 %v812
    %1810 = vmatmul.mubr.bf16.gmra.mrb[0].mxu0 %v811
    %v1811 = vpop.f32.mrb[0].mxu0
    %v1812 = vadd.f32 %v1772, %v1811
    %v1813 = vpop.f32.mrb[0].mxu0
    %v1814 = vpop.f32.mrb[0].mxu0
    %v1815 = vpop.f32.mrb[0].mxu0
    %1816 = vdwg.mxu0
    %1817 = vmatprep.subr.bf16.mxu0 0
    %1818 = vmatpush1.bf16.msra.mxu0 %v1472
    %1819 = vmatprep.subr.bf16.mxu0 0
    %1820 = vmatpush1.bf16.msra.mxu0 %v1475
    %1821 = vmatprep.subr.bf16.mxu0 0
    %1822 = vmatpush1.bf16.msra.mxu0 %v1478
    %1823 = vmatprep.subr.bf16.mxu0 0
    %1824 = vmatpush1.bf16.msra.mxu0 %v1481
    %1825 = vmatprep.subr.bf16.mxu0 0
    %1826 = vmatpush1.bf16.msra.mxu0 %v1484
    %1827 = vmatprep.subr.bf16.mxu0 0
    %1828 = vmatpush1.bf16.msra.mxu0 %v1487
    %1829 = vmatprep.subr.bf16.mxu0 0
    %1830 = vmatpush1.bf16.msra.mxu0 %v1490
    %1831 = vmatprep.subr.bf16.mxu0 0
    %1832 = vmatpush1.bf16.msra.mxu0 %v1493
    %1833 = vmatprep.subr.bf16.mxu0 0
    %1834 = vmatpush1.bf16.msra.mxu0 0
    %1835 = vmatprep.subr.bf16.mxu0 0
    %1836 = vmatpush1.bf16.msra.mxu0 0
    %1837 = vmatprep.subr.bf16.mxu0 0
    %1838 = vmatpush1.bf16.msra.mxu0 0
    %1839 = vmatprep.subr.bf16.mxu0 0
    %1840 = vmatpush1.bf16.msra.mxu0 0
    %1841 = vmatprep.subr.bf16.mxu0 0
    %1842 = vmatpush1.bf16.msra.mxu0 0
    %1843 = vmatprep.subr.bf16.mxu0 0
    %1844 = vmatpush1.bf16.msra.mxu0 0
    %1845 = vmatprep.subr.bf16.mxu0 0
    %1846 = vmatpush1.bf16.msra.mxu0 0
    %1847 = vmatprep.subr.bf16.mxu0 0
    %1848 = vmatpush1.bf16.msra.mxu0 0
    %1849 = vmatprep.mubr.bf16.mxu0 0
    %1850 = vmatmul.mubr.bf16.gmra.mrb[0].mxu0 %v813
    %v1851 = vpop.f32.mrb[0].mxu0
    %v1852 = vadd.f32 %v1812, %v1851
    %v1853 = vpop.f32.mrb[0].mxu0
    %v1854 = vpop.f32.mrb[0].mxu0
    %v1855 = vpop.f32.mrb[0].mxu0
    %1856 = vdwg.mxu0
    %v1857 = vpack.c.bf16 %v1731, %v1731
    %v1858 = vpack.c.bf16 %v1733, %v1733
    %v1859 = vpack.c.bf16 %v1852, %v1852
    %v1860 = vld [vmem:[%s4] sm:$0x7]
    %v1863 = vunpack.c.l.s4 1966171168
    %v1864 = vunpack.c.0.s8 %v1863
    %v1865 = vlaneseq
    %v1866 = vshrl.u32 %v1865, 7
    %v1867 = vsub.s32 %v1864, %v1866
    %v1868 = vrot.slane %v1860, %v1867
    %v1869 = vcombine.high %v1868, %v1868
    %v1871 = vunpack.c.l.s4 1966171168
    %v1872 = vunpack.c.0.s8 %v1871
    %v1873 = vlaneseq
    %v1874 = vshrl.u32 %v1873, 7
    %v1875 = vsub.s32 %v1872, %v1874
    %v1876 = vrot.slane %v1868, %v1875
    %v1878 = vunpack.c.l.s4 1966171168
    %v1879 = vunpack.c.0.s8 %v1878
    %v1880 = vlaneseq
    %v1881 = vshrl.u32 %v1880, 7
    %v1882 = vsub.s32 %v1879, %v1881
    %v1883 = vrot.slane %v1869, %v1882
    %v1884 = vcombine.high %v1876, %v1876
    %v1886 = vpack.i.b16 %v1876, %v1876
    %v1888 = vlaneseq
    %v1889 = vshrl.u32 %v1888, 7
    %v1890 = vsub.s32 0, %v1889
    %v1891 = vrot.slane %v1886, %v1890
    %v1893 = vpack.i.b16 %v1883, %v1883
    %v1895 = vlaneseq
    %v1896 = vshrl.u32 %v1895, 7
    %v1897 = vsub.s32 0, %v1896
    %v1898 = vrot.slane %v1893, %v1897
    %v1900 = vpack.i.b16 %v1884, %v1884
    %v1902 = vlaneseq
    %v1903 = vshrl.u32 %v1902, 7
    %v1904 = vsub.s32 0, %v1903
    %v1905 = vrot.slane %v1900, %v1904
    %v1906 = vadd.bf16 %v1857, %v1891
    %v1907 = vadd.bf16 %v1858, %v1898
    %v1908 = vadd.bf16 %v1859, %v1905
    %v1909 = vmax.bf16 %v1906, 0
    %v1910 = vmax.bf16 %v1907, 0
    %v1911 = vmax.bf16 %v1908, 0
    %v1912 = vld [vmem:[#allocation8] sm:$0xf]
    %v1913 = vld [vmem:[#allocation8 + $0x4] sm:$0xf]
    %v1914 = vld [vmem:[#allocation8 + $0x8] sm:$0xf]
    %v1915 = vld [vmem:[#allocation8 + $0xc] sm:$0xf]
    %v1916 = vld [vmem:[#allocation8 + $0x10] sm:$0xf]
    %v1917 = vld [vmem:[#allocation8 + $0x14] sm:$0xf]
    %v1918 = vld [vmem:[#allocation8 + $0x18] sm:$0xf]
    %v1919 = vld [vmem:[#allocation8 + $0x1c] sm:$0xf]
    %v1920 = vld [vmem:[#allocation8 + $0x20] sm:$0xf]
    %v1921 = vld [vmem:[#allocation8 + $0x24] sm:$0xf]
    %v1922 = vld [vmem:[#allocation8 + $0x28] sm:$0xf]
    %v1923 = vld [vmem:[#allocation8 + $0x2c] sm:$0xf]
    %v1924 = vld [vmem:[#allocation8 + $0x30] sm:$0xf]
    %v1925 = vld [vmem:[#allocation8 + $0x34] sm:$0xf]
    %v1926 = vld [vmem:[#allocation8 + $0x38] sm:$0xf]
    %v1927 = vld [vmem:[#allocation8 + $0x3c] sm:$0xf]
    %v1928 = vld [vmem:[#allocation8 + $0x40] sm:$0xf]
    %v1929 = vld [vmem:[#allocation8 + $0x44] sm:$0xf]
    %v1930 = vld [vmem:[#allocation8 + $0x48] sm:$0xf]
    %v1931 = vld [vmem:[#allocation8 + $0x4c] sm:$0xf]
    %v1932 = vld [vmem:[#allocation8 + $0x50] sm:$0xf]
    %v1933 = vld [vmem:[#allocation8 + $0x54] sm:$0xf]
    %v1934 = vld [vmem:[#allocation8 + $0x58] sm:$0xf]
    %v1935 = vld [vmem:[#allocation8 + $0x5c] sm:$0xf]
    %v1936 = vld [vmem:[#allocation8 + $0x60] sm:$0xf]
    %v1937 = vld [vmem:[#allocation8 + $0x64] sm:$0xf]
    %v1938 = vld [vmem:[#allocation8 + $0x68] sm:$0xf]
    %v1939 = vld [vmem:[#allocation8 + $0x6c] sm:$0xf]
    %v1940 = vld [vmem:[#allocation8 + $0x70] sm:$0xf]
    %v1941 = vld [vmem:[#allocation8 + $0x74] sm:$0xf]
    %v1942 = vld [vmem:[#allocation8 + $0x78] sm:$0xf]
    %v1943 = vld [vmem:[#allocation8 + $0x7c] sm:$0xf]
    %v1944 = vld [vmem:[#allocation8 + $0x80] sm:$0xf]
    %v1945 = vld [vmem:[#allocation8 + $0x84] sm:$0xf]
    %v1946 = vld [vmem:[#allocation8 + $0x88] sm:$0xf]
    %v1947 = vld [vmem:[#allocation8 + $0x8c] sm:$0xf]
    %v1948 = vld [vmem:[#allocation8 + $0x90] sm:$0xf]
    %v1949 = vld [vmem:[#allocation8 + $0x94] sm:$0xf]
    %v1950 = vld [vmem:[#allocation8 + $0x98] sm:$0xf]
    %v1951 = vld [vmem:[#allocation8 + $0x9c] sm:$0xf]
    %v1952 = vld [vmem:[#allocation8 + $0xa0] sm:$0xf]
    %v1953 = vld [vmem:[#allocation8 + $0xa4] sm:$0xf]
    %v1954 = vld [vmem:[#allocation8 + $0xa8] sm:$0xf]
    %v1955 = vld [vmem:[#allocation8 + $0xac] sm:$0xf]
    %v1956 = vld [vmem:[#allocation8 + $0xb0] sm:$0xf]
    %v1957 = vld [vmem:[#allocation8 + $0xb4] sm:$0xf]
    %v1958 = vld [vmem:[#allocation8 + $0xb8] sm:$0xf]
    %v1959 = vld [vmem:[#allocation8 + $0xbc] sm:$0xf]
    %v1960 = vld [vmem:[%s6] sm:$0x1]
    %v1962 = vlaneseq
    %v1963 = vshrl.u32 %v1962, 7
    %v1964 = vsub.s32 0, %v1963
    %v1965 = vrot.slane %v1960, %v1964
    %v2015 = vunpack.c.l.b16 %v1912
    %v2016 = vunpack.c.l.b16 %v1913
    %v2017 = vunpack.c.l.b16 %v1914
    %v2018 = vunpack.c.l.b16 %v1915
    %v2019 = vunpack.c.l.b16 %v1916
    %v2020 = vunpack.c.l.b16 %v1917
    %v2021 = vunpack.c.l.b16 %v1918
    %v2022 = vunpack.c.l.b16 %v1919
    %v2023 = vunpack.c.l.b16 %v1920
    %v2024 = vunpack.c.l.b16 %v1921
    %v2025 = vunpack.c.l.b16 %v1922
    %v2026 = vunpack.c.l.b16 %v1923
    %v2027 = vunpack.c.l.b16 %v1924
    %v2028 = vunpack.c.l.b16 %v1925
    %v2029 = vunpack.c.l.b16 %v1926
    %v2030 = vunpack.c.l.b16 %v1927
    %v2031 = vunpack.c.l.b16 %v1928
    %v2032 = vunpack.c.l.b16 %v1929
    %v2033 = vunpack.c.l.b16 %v1930
    %v2034 = vunpack.c.l.b16 %v1931
    %v2035 = vunpack.c.l.b16 %v1932
    %v2036 = vunpack.c.l.b16 %v1933
    %v2037 = vunpack.c.l.b16 %v1934
    %v2038 = vunpack.c.l.b16 %v1935
    %v2039 = vunpack.c.l.b16 %v1936
    %v2040 = vunpack.c.l.b16 %v1937
    %v2041 = vunpack.c.l.b16 %v1938
    %v2042 = vunpack.c.l.b16 %v1939
    %v2043 = vunpack.c.l.b16 %v1940
    %v2044 = vunpack.c.l.b16 %v1941
    %v2045 = vunpack.c.l.b16 %v1942
    %v2046 = vunpack.c.l.b16 %v1943
    %v2047 = vunpack.c.l.b16 %v1944
    %v2048 = vunpack.c.l.b16 %v1945
    %v2049 = vunpack.c.l.b16 %v1946
    %v2050 = vunpack.c.l.b16 %v1947
    %v2051 = vunpack.c.l.b16 %v1948
    %v2052 = vunpack.c.l.b16 %v1949
    %v2053 = vunpack.c.l.b16 %v1950
    %v2054 = vunpack.c.l.b16 %v1951
    %v2055 = vunpack.c.l.b16 %v1952
    %v2056 = vunpack.c.l.b16 %v1953
    %v2057 = vunpack.c.l.b16 %v1954
    %v2058 = vunpack.c.l.b16 %v1955
    %v2059 = vunpack.c.l.b16 %v1956
    %v2060 = vunpack.c.l.b16 %v1957
    %v2061 = vunpack.c.l.b16 %v1958
    %v2062 = vunpack.c.l.b16 %v1959
    %v2063 = vpack.c.b16 %v2016, %v2015
    %v2064 = vpack.c.b16 %v2018, %v2017
    %v2065 = vpack.c.b16 %v2020, %v2019
    %v2066 = vpack.c.b16 %v2022, %v2021
    %v2067 = vpack.c.b16 %v2024, %v2023
    %v2068 = vpack.c.b16 %v2026, %v2025
    %v2069 = vpack.c.b16 %v2028, %v2027
    %v2070 = vpack.c.b16 %v2030, %v2029
    %v2071 = vpack.c.b16 %v2032, %v2031
    %v2072 = vpack.c.b16 %v2034, %v2033
    %v2073 = vpack.c.b16 %v2036, %v2035
    %v2074 = vpack.c.b16 %v2038, %v2037
    %v2075 = vpack.c.b16 %v2040, %v2039
    %v2076 = vpack.c.b16 %v2042, %v2041
    %v2077 = vpack.c.b16 %v2044, %v2043
    %v2078 = vpack.c.b16 %v2046, %v2045
    %v2079 = vpack.c.b16 %v2048, %v2047
    %v2080 = vpack.c.b16 %v2050, %v2049
    %v2081 = vpack.c.b16 %v2052, %v2051
    %v2082 = vpack.c.b16 %v2054, %v2053
    %v2083 = vpack.c.b16 %v2056, %v2055
    %v2084 = vpack.c.b16 %v2058, %v2057
    %v2085 = vpack.c.b16 %v2060, %v2059
    %v2086 = vpack.c.b16 %v2062, %v2061
    %2111 = vmatprep.subr.bf16.mxu0 0
    %2112 = vmatpush1.bf16.msra.mxu0 %v2063
    %2113 = vmatprep.subr.bf16.mxu0 0
    %2114 = vmatpush1.bf16.msra.mxu0 %v2064
    %2115 = vmatprep.subr.bf16.mxu0 0
    %2116 = vmatpush1.bf16.msra.mxu0 %v2065
    %2117 = vmatprep.subr.bf16.mxu0 0
    %2118 = vmatpush1.bf16.msra.mxu0 %v2066
    %2119 = vmatprep.subr.bf16.mxu0 0
    %2120 = vmatpush1.bf16.msra.mxu0 %v2067
    %2121 = vmatprep.subr.bf16.mxu0 0
    %2122 = vmatpush1.bf16.msra.mxu0 %v2068
    %2123 = vmatprep.subr.bf16.mxu0 0
    %2124 = vmatpush1.bf16.msra.mxu0 %v2069
    %2125 = vmatprep.subr.bf16.mxu0 0
    %2126 = vmatpush1.bf16.msra.mxu0 %v2070
    %2127 = vmatprep.subr.bf16.mxu0 0
    %2128 = vmatpush1.bf16.msra.mxu0 %v2071
    %2129 = vmatprep.subr.bf16.mxu0 0
    %2130 = vmatpush1.bf16.msra.mxu0 %v2072
    %2131 = vmatprep.subr.bf16.mxu0 0
    %2132 = vmatpush1.bf16.msra.mxu0 %v2073
    %2133 = vmatprep.subr.bf16.mxu0 0
    %2134 = vmatpush1.bf16.msra.mxu0 %v2074
    %2135 = vmatprep.subr.bf16.mxu0 0
    %2136 = vmatpush1.bf16.msra.mxu0 %v2075
    %2137 = vmatprep.subr.bf16.mxu0 0
    %2138 = vmatpush1.bf16.msra.mxu0 %v2076
    %2139 = vmatprep.subr.bf16.mxu0 0
    %2140 = vmatpush1.bf16.msra.mxu0 %v2077
    %2141 = vmatprep.subr.bf16.mxu0 0
    %2142 = vmatpush1.bf16.msra.mxu0 %v2078
    %2143 = vmatprep.mubr.bf16.mxu0 %v1910
    %2144 = vmatmul.mubr.bf16.gmra.mrb[0].mxu0 %v1909
    %v2145 = vpop.f32.mrb[0].mxu0
    %v2146 = vadd.f32 %v1965, %v2145
    %v2147 = vpop.f32.mrb[0].mxu0
    %v2148 = vpop.f32.mrb[0].mxu0
    %v2149 = vpop.f32.mrb[0].mxu0
    %2150 = vdwg.mxu0
    %2151 = vmatprep.subr.bf16.mxu0 0
    %2152 = vmatpush1.bf16.msra.mxu0 %v2079
    %2153 = vmatprep.subr.bf16.mxu0 0
    %2154 = vmatpush1.bf16.msra.mxu0 %v2080
    %2155 = vmatprep.subr.bf16.mxu0 0
    %2156 = vmatpush1.bf16.msra.mxu0 %v2081
    %2157 = vmatprep.subr.bf16.mxu0 0
    %2158 = vmatpush1.bf16.msra.mxu0 %v2082
    %2159 = vmatprep.subr.bf16.mxu0 0
    %2160 = vmatpush1.bf16.msra.mxu0 %v2083
    %2161 = vmatprep.subr.bf16.mxu0 0
    %2162 = vmatpush1.bf16.msra.mxu0 %v2084
    %2163 = vmatprep.subr.bf16.mxu0 0
    %2164 = vmatpush1.bf16.msra.mxu0 %v2085
    %2165 = vmatprep.subr.bf16.mxu0 0
    %2166 = vmatpush1.bf16.msra.mxu0 %v2086
    %2167 = vmatprep.subr.bf16.mxu0 0
    %2168 = vmatpush1.bf16.msra.mxu0 0
    %2169 = vmatprep.subr.bf16.mxu0 0
    %2170 = vmatpush1.bf16.msra.mxu0 0
    %2171 = vmatprep.subr.bf16.mxu0 0
    %2172 = vmatpush1.bf16.msra.mxu0 0
    %2173 = vmatprep.subr.bf16.mxu0 0
    %2174 = vmatpush1.bf16.msra.mxu0 0
    %2175 = vmatprep.subr.bf16.mxu0 0
    %2176 = vmatpush1.bf16.msra.mxu0 0
    %2177 = vmatprep.subr.bf16.mxu0 0
    %2178 = vmatpush1.bf16.msra.mxu0 0
    %2179 = vmatprep.subr.bf16.mxu0 0
    %2180 = vmatpush1.bf16.msra.mxu0 0
    %2181 = vmatprep.subr.bf16.mxu0 0
    %2182 = vmatpush1.bf16.msra.mxu0 0
    %2183 = vmatprep.mubr.bf16.mxu0 0
    %2184 = vmatmul.mubr.bf16.gmra.mrb[0].mxu0 %v1911
    %v2185 = vpop.f32.mrb[0].mxu0
    %v2186 = vadd.f32 %v2146, %v2185
    %v2187 = vpop.f32.mrb[0].mxu0
    %v2188 = vpop.f32.mrb[0].mxu0
    %v2189 = vpop.f32.mrb[0].mxu0
    %2190 = vdwg.mxu0
    %2191 = vst [vmem:[#allocation10] sm:$0xff] %v2186
    // Predicated region
    $region46: #{tpu_custom_call.1} parent=1 // pred_check
      _
    $region47: #{tpu_custom_call.1} parent=1 // pred_check_branch
      %2193 = sbr.rel (0) target = $region49
    $region48: #{tpu_custom_call.1} parent=1 // pred_region
      %s2195 = ssub.s32 128, 128
      %2196 = vsyncadd [#allocation4], %s2195
      %s2198 = sshll.u32 [#allocation10], 4
      %s2199 = int_to_ptr.vmem [resolvable:$true] %s2198
      %2201 = dma.vmem_to_hbm [thread:$0]  %s2199, 128, %s7, [#allocation4]
    $region49: #{tpu_custom_call.1} parent=1 // pred_fallthru
      _
    // Predicated region
    $region50: #{tpu_custom_call.1} parent=1 // pred_check
      _
    $region51: #{tpu_custom_call.1} parent=1 // pred_check_branch
      %2203 = sbr.rel (0) target = $region53
    $region52: #{tpu_custom_call.1} parent=1 // pred_region
      %2204 = dma.done [#allocation4], 128
    $region53: #{tpu_custom_call.1} parent=1 // pred_fallthru
      _
    %2205 = vsyncpa [#allocation3], 1
    %2206 = vsyncpa [#allocation6], 1
    %2207 = vsyncpa [#allocation9], 1
    %2208 = vsyncpa [#allocation4], 1

</llo_original>
